<compile_context>
chip_gen: v5e
topology: v5e:2x2
jax: 0.10.0
libtpu: 0.0.40
codegen_flags: <defaults>
</compile_context>

<pallas_src>
import functools

import numpy as np
import jax
import jax.numpy as jnp
from jax.experimental import pallas as pl
from jax.experimental.pallas import tpu as pltpu

_COMPUTE_DTYPE = jnp.bfloat16   # MXU-native on v5e / v6e / v7x


# ------------------------------- kernel ---------------------------------------
def codex_dose_kernel(x_ref, tdose_ref, valid_ref,
                      ew1_ref, eb1_ref, ew2_ref, eb2_ref,
                      wte_ref, wtd_ref, bt_ref,
                      dw1_ref, db1_ref, dw2_ref, db2_ref,
                      dw3m_ref, db3m_ref, dw3v_ref, db3v_ref,
                      recon_ref, latent_ref,
                      *, num_treatments, in_features, latent_dim):
    T = num_treatments
    F = in_features
    H2 = latent_dim
    cd = _COMPUTE_DTYPE

    x = x_ref[...]                               # (Bt, F)  fp32
    tdose = tdose_ref[...]                       # (Bt, T)  fp32
    bt_rows = x.shape[0]

    # ---- encoder: Linear+ReLU, Linear+ReLU (bf16 operands, f32 accumulate) ---
    h = jnp.dot(x.astype(cd), ew1_ref[...],
                preferred_element_type=jnp.float32) + eb1_ref[...]
    h = jnp.maximum(h, 0.0)
    emb = jnp.dot(h.astype(cd), ew2_ref[...],
                  preferred_element_type=jnp.float32) + eb2_ref[...]
    emb = jnp.maximum(emb, 0.0)                  # (Bt, H2)

    # ---- treatment = argmax(dosages, axis=1), first-occurrence tie break -----
    # (fp32 compare — identical tie-breaking to the wrapper's jnp.argmax, so
    #  the full-batch guard stays consistent with the in-kernel routing)
    max_val = jnp.max(tdose, axis=1, keepdims=True)              # (Bt, 1)
    col_t = jax.lax.broadcasted_iota(jnp.int32, tdose.shape, 1)  # (Bt, T)
    treatment = jnp.min(jnp.where(tdose == max_val, col_t, T),
                        axis=1, keepdims=True)                   # (Bt, 1) int32

    # ---- fused treatment heads: 2 MXU calls cover all T heads ----------------
    #   t_out[:, t*H2:(t+1)*H2] = emb @ W_emb[t] + dose_t * w_dose[t] + b[t]
    t_out = (jnp.dot(emb.astype(cd), wte_ref[...],
                     preferred_element_type=jnp.float32)
             + jnp.dot(tdose.astype(cd), wtd_ref[...],
                       preferred_element_type=jnp.float32)
             + bt_ref[...])
    t_out = jnp.maximum(t_out, 0.0)              # (Bt, T*H2)

    # ---- selection: lane-broadcast treatment ONCE; per-t compare is pure VPU,
    #      the full-batch ">1 rows" guard is a scalar read from SMEM. ----------
    treat_b = jnp.broadcast_to(treatment, (bt_rows, H2))          # hoisted
    latent = jnp.zeros((bt_rows, H2), jnp.float32)
    for t in range(T):                           # tiny static unroll
        sel_t = jnp.logical_and(treat_b == t, valid_ref[t] > 0)
        latent = latent + jnp.where(sel_t, t_out[:, t * H2:(t + 1) * H2], 0.0)
    latent_ref[...] = latent.astype(latent_ref.dtype)

    # ---- decoder: Linear+ReLU, Linear+ReLU, split final layer ----------------
    d = jnp.dot(latent.astype(cd), dw1_ref[...],
                preferred_element_type=jnp.float32) + db1_ref[...]
    d = jnp.maximum(d, 0.0)
    d = jnp.dot(d.astype(cd), dw2_ref[...],
                preferred_element_type=jnp.float32) + db2_ref[...]
    d = jnp.maximum(d, 0.0)
    dc = d.astype(cd)

    means = jnp.dot(dc, dw3m_ref[...],
                    preferred_element_type=jnp.float32) + db3m_ref[...]
    vraw = jnp.dot(dc, dw3v_ref[...],
                   preferred_element_type=jnp.float32) + db3v_ref[...]
    # stable softplus, computed ONLY on the vars half (half the EUP work)
    sp = jnp.maximum(vraw, 0.0) + jnp.log1p(jnp.exp(-jnp.abs(vraw)))
    recon_ref[:, :F] = means.astype(recon_ref.dtype)
    recon_ref[:, F:] = (sp + 0.001).astype(recon_ref.dtype)


# ---------------------- one-time weight packing (hoisted) ----------------------
def pack_params(params, compute_dtype=_COMPUTE_DTYPE):
    """Pack / cast weights once at init time, NOT per forward call."""
    T, _, H2 = params["tw_emb"].shape
    F = params["ew1"].shape[0]
    cd = compute_dtype

    # wte: (H2, T*H2), column block t == tw_emb[t]
    wte = jnp.transpose(params["tw_emb"], (1, 0, 2)).reshape(H2, T * H2)
    # wtd: (T, T*H2) block matrix, row t carries tw_dose[t] in column block t
    eye = jnp.eye(T, dtype=jnp.float32)
    wtd = (eye[:, :, None] * params["tw_dose"][:, 0, :][None, :, :]).reshape(T, T * H2)
    # bt : (1, T*H2) packed biases
    bt = jnp.transpose(params["tb"], (1, 0, 2)).reshape(1, T * H2)

    dw3, db3 = params["dw3"], params["db3"]

    return dict(
        ew1=params["ew1"].astype(cd), eb1=params["eb1"],
        ew2=params["ew2"].astype(cd), eb2=params["eb2"],
        wte=wte.astype(cd), wtd=wtd.astype(cd), bt=bt,
        dw1=params["dw1"].astype(cd), db1=params["db1"],
        dw2=params["dw2"].astype(cd), db2=params["db2"],
        dw3m=dw3[:, :F].astype(cd), db3m=db3[:, :F],   # means half
        dw3v=dw3[:, F:].astype(cd), db3v=db3[:, F:],   # vars half
        num_treatments=T, in_features=F, latent_dim=H2,
    )


# --------------------------------- wrapper -------------------------------------
def codex_dose_forward(x, tdose, packed, tile_b=None, out_dtype=jnp.float32):
    B, F = x.shape
    T = packed["num_treatments"]
    H2 = packed["latent_dim"]
    assert F == packed["in_features"]

    # ---- global `sum(mask) > 1` guard (needs the FULL batch -> wrapper) ------
    t_idx = jnp.argmax(tdose, axis=1)
    counts = jnp.sum((t_idx[:, None] == jnp.arange(T)[None, :]).astype(jnp.int32),
                     axis=0)
    valid = (counts > 1).astype(jnp.int32)                       # (T,) SMEM flags

    weight_keys = ("ew1", "eb1", "ew2", "eb2", "wte", "wtd", "bt",
                   "dw1", "db1", "dw2", "db2", "dw3m", "db3m", "dw3v", "db3v")
    weights = [packed[k] for k in weight_keys]
    resident_bytes = sum(int(w.size) * w.dtype.itemsize for w in weights)

    # ---- VMEM-aware batch tile (critical on v7x's 64 MiB VMEM) ---------------
    try:
        vmem_cap = int(pltpu.get_tpu_info().vmem_capacity_bytes)
    except Exception:
        vmem_cap = 64 * 1024 * 1024          # conservative fallback (v7x per-TC)
    out_isz = np.dtype(out_dtype).itemsize
    # double-buffered x + tdose (inputs) and recon + latent (outputs), per row:
    bytes_per_row = 2 * ((F + T) * x.dtype.itemsize
                         + 2 * F * out_isz + H2 * out_isz)

    if tile_b is None or tile_b <= 0 or B % tile_b != 0:
        budget = int(0.7 * vmem_cap) - 2 * resident_bytes
        cands = [d for d in range(8, min(B, 1024) + 1, 8) if B % d == 0]
        if not cands:
            cands = [B]                       # full-batch block is always legal
        fits = [d for d in cands if d * bytes_per_row <= budget] or [min(cands)]
        pref = [d for d in fits if B // d >= 4]    # keep the pipeline fed
        tile_b = max(pref) if (pref and max(pref) >= 128) else max(fits)
    grid = (B // tile_b,)

    vmem_limit = min(vmem_cap,
                     max(2 * resident_bytes + tile_b * bytes_per_row + (8 << 20),
                         32 << 20))

    kernel = functools.partial(codex_dose_kernel,
                               num_treatments=T, in_features=F, latent_dim=H2)

    def run(single_buffer_weights):
        if single_buffer_weights:
            # Residents never change across the grid -> single-buffer them.
            def full_spec(a):
                return pl.BlockSpec(a.shape, lambda i: (0, 0),
                                    pipeline_mode=pl.Buffered(1))
        else:
            def full_spec(a):
                return pl.BlockSpec(a.shape, lambda i: (0, 0))

        in_specs = ([pl.BlockSpec((tile_b, F), lambda i: (i, 0)),
                     pl.BlockSpec((tile_b, T), lambda i: (i, 0)),
                     pl.BlockSpec(memory_space=pltpu.MemorySpace.SMEM)]  # valid
                    + [full_spec(w) for w in weights])

        return pl.pallas_call(
            kernel,
            grid=grid,
            out_shape=(jax.ShapeDtypeStruct((B, 2 * F), out_dtype),
                       jax.ShapeDtypeStruct((B, H2), out_dtype)),
            in_specs=in_specs,
            out_specs=(pl.BlockSpec((tile_b, 2 * F), lambda i: (i, 0)),
                       pl.BlockSpec((tile_b, H2), lambda i: (i, 0))),
            compiler_params=pltpu.CompilerParams(
                dimension_semantics=("parallel",),
                vmem_limit_bytes=vmem_limit),
        )(x, tdose, valid, *weights)

    try:
        recon, latent = run(True)
    except Exception:
        # pl.Buffered(1) rejected by this jax version -> default double buffering
        recon, latent = run(False)
    return recon, latent


# ---------------------------- parameter setup ---------------------------------
def init_params(key, in_features, num_nodes, num_treatments):
    H0, H1, H2 = num_nodes

    def linear(k, fan_in, fan_out):
        k1, k2 = jax.random.split(k)
        bound = 1.0 / np.sqrt(fan_in)
        w = jax.random.uniform(k1, (fan_in, fan_out), jnp.float32, -bound, bound)
        b = jax.random.uniform(k2, (1, fan_out), jnp.float32, -bound, bound)
        return w, b

    keys = jax.random.split(key, 5 + num_treatments)
    ew1, eb1 = linear(keys[0], in_features, H0)       # encoder layer 1
    ew2, eb2 = linear(keys[1], H0, H2)                # encoder output layer

    tw_emb, tw_dose, tb = [], [], []
    for t in range(num_treatments):                   # T_rep heads: Linear(H2+1 -> H2)
        w, b = linear(keys[2 + t], H2 + 1, H2)
        tw_emb.append(w[:H2])                         # (H2, H2)
        tw_dose.append(w[H2:H2 + 1])                  # (1, H2)
        tb.append(b)                                  # (1, H2)
    tw_emb = jnp.stack(tw_emb)                        # (T, H2, H2)
    tw_dose = jnp.stack(tw_dose)                      # (T, 1, H2)
    tb = jnp.stack(tb)                                # (T, 1, H2)

    off = 2 + num_treatments                          # decoder: H2 -> H1 -> H0 -> 2F
    dw1, db1 = linear(keys[off], H2, H1)
    dw2, db2 = linear(keys[off + 1], H1, H0)
    dw3, db3 = linear(keys[off + 2], H0, 2 * in_features)

    return dict(ew1=ew1, eb1=eb1, ew2=ew2, eb2=eb2,
                tw_emb=tw_emb, tw_dose=tw_dose, tb=tb,
                dw1=dw1, db1=db1, dw2=dw2, db2=db2, dw3=dw3, db3=db3)


# ---------------------------- pure-JAX reference ------------------------------
def reference_forward(x, tdose, p):
    B, F = x.shape
    T = tdose.shape[1]
    h = jax.nn.relu(x @ p["ew1"] + p["eb1"])
    emb = jax.nn.relu(h @ p["ew2"] + p["eb2"])
    treatment = jnp.argmax(tdose, axis=1)
    latent = jnp.zeros((B, p["ew2"].shape[1]), jnp.float32)
    for t in range(T):
        mask = treatment == t
        valid = jnp.sum(mask) > 1
        out_t = jax.nn.relu(emb @ p["tw_emb"][t]
                            + tdose[:, t:t + 1] * p["tw_dose"][t] + p["tb"][t])
        latent = latent + jnp.where(mask[:, None] & valid, out_t, 0.0)
    d = jax.nn.relu(latent @ p["dw1"] + p["db1"])
    d = jax.nn.relu(d @ p["dw2"] + p["db2"])
    recon = d @ p["dw3"] + p["db3"]
    means = recon[:, :F]
    gene_vars = jax.nn.softplus(recon[:, F:]) + 0.001
    return jnp.concatenate([means, gene_vars], axis=1), latent


if __name__ == "__main__":
    B = 8                      # batch
    F = 16                     # in_features (genes)
    num_nodes = (32, 24, 16)   # H0, H1, H2 (latent dim = 16)
    T = 3                      # num_treatments

    key = jax.random.PRNGKey(0)
    kx, kd, kp = jax.random.split(key, 3)
    x = jax.random.normal(kx, (B, F), jnp.float32)
    treatment_and_dosages = jax.random.uniform(kd, (B, T), jnp.float32)

    params = init_params(kp, F, num_nodes, T)
    packed = pack_params(params)            # one-time packing (hoisted)

    recon, latent = codex_dose_forward(x, treatment_and_dosages, packed)
    recon = jax.block_until_ready(recon)
    latent = jax.block_until_ready(latent)

    recon_ref, latent_ref = reference_forward(x, treatment_and_dosages, params)
    # bf16 MXU operands in the kernel vs fp32 reference -> looser tolerance.
    np.testing.assert_allclose(np.asarray(recon, dtype=np.float32),
                               np.asarray(recon_ref), rtol=3e-2, atol=3e-2)
    np.testing.assert_allclose(np.asarray(latent, dtype=np.float32),
                               np.asarray(latent_ref), rtol=3e-2, atol=3e-2)

    print("KERNEL_OK")
</pallas_src>

<mosaic_0001>
module attributes {stable_mosaic.version = 11 : i64} {
  func.func @codex_dose_kernel(%arg0: i32, %arg1: memref<8x16xf32, #tpu.memory_space<vmem>>, %arg2: memref<8x3xf32, #tpu.memory_space<vmem>>, %arg3: memref<3xi32, #tpu.memory_space<smem>>, %arg4: memref<16x32xbf16, #tpu.memory_space<vmem>>, %arg5: memref<1x32xf32, #tpu.memory_space<vmem>>, %arg6: memref<32x16xbf16, #tpu.memory_space<vmem>>, %arg7: memref<1x16xf32, #tpu.memory_space<vmem>>, %arg8: memref<16x48xbf16, #tpu.memory_space<vmem>>, %arg9: memref<3x48xbf16, #tpu.memory_space<vmem>>, %arg10: memref<1x48xf32, #tpu.memory_space<vmem>>, %arg11: memref<16x24xbf16, #tpu.memory_space<vmem>>, %arg12: memref<1x24xf32, #tpu.memory_space<vmem>>, %arg13: memref<24x32xbf16, #tpu.memory_space<vmem>>, %arg14: memref<1x32xf32, #tpu.memory_space<vmem>>, %arg15: memref<32x16xbf16, #tpu.memory_space<vmem>>, %arg16: memref<1x16xf32, #tpu.memory_space<vmem>>, %arg17: memref<32x16xbf16, #tpu.memory_space<vmem>>, %arg18: memref<1x16xf32, #tpu.memory_space<vmem>>, %arg19: memref<8x32xf32, #tpu.memory_space<vmem>>, %arg20: memref<8x16xf32, #tpu.memory_space<vmem>>) attributes {dimension_semantics = [#tpu.dimension_semantics<parallel>], iteration_bounds = array<i64: 1>, scalar_prefetch = 0 : i64, scratch_operands = 0 : i64, tpu.core_type = #tpu.core_type<tc>, window_params = [{transform_indices = @transform_0, window_bounds = array<i64: 8, 16>}, {transform_indices = @transform_1, window_bounds = array<i64: 8, 3>}, {transform_indices = @transform_2, window_bounds = array<i64: 3>}, {pipeline_mode = #tpu.pipeline_mode<synchronous>, transform_indices = @transform_3, window_bounds = array<i64: 16, 32>}, {pipeline_mode = #tpu.pipeline_mode<synchronous>, transform_indices = @transform_4, window_bounds = array<i64: 1, 32>}, {pipeline_mode = #tpu.pipeline_mode<synchronous>, transform_indices = @transform_5, window_bounds = array<i64: 32, 16>}, {pipeline_mode = #tpu.pipeline_mode<synchronous>, transform_indices = @transform_6, window_bounds = array<i64: 1, 16>}, {pipeline_mode = #tpu.pipeline_mode<synchronous>, transform_indices = @transform_7, window_bounds = array<i64: 16, 48>}, {pipeline_mode = #tpu.pipeline_mode<synchronous>, transform_indices = @transform_8, window_bounds = array<i64: 3, 48>}, {pipeline_mode = #tpu.pipeline_mode<synchronous>, transform_indices = @transform_9, window_bounds = array<i64: 1, 48>}, {pipeline_mode = #tpu.pipeline_mode<synchronous>, transform_indices = @transform_10, window_bounds = array<i64: 16, 24>}, {pipeline_mode = #tpu.pipeline_mode<synchronous>, transform_indices = @transform_11, window_bounds = array<i64: 1, 24>}, {pipeline_mode = #tpu.pipeline_mode<synchronous>, transform_indices = @transform_12, window_bounds = array<i64: 24, 32>}, {pipeline_mode = #tpu.pipeline_mode<synchronous>, transform_indices = @transform_13, window_bounds = array<i64: 1, 32>}, {pipeline_mode = #tpu.pipeline_mode<synchronous>, transform_indices = @transform_14, window_bounds = array<i64: 32, 16>}, {pipeline_mode = #tpu.pipeline_mode<synchronous>, transform_indices = @transform_15, window_bounds = array<i64: 1, 16>}, {pipeline_mode = #tpu.pipeline_mode<synchronous>, transform_indices = @transform_16, window_bounds = array<i64: 32, 16>}, {pipeline_mode = #tpu.pipeline_mode<synchronous>, transform_indices = @transform_17, window_bounds = array<i64: 1, 16>}, {transform_indices = @transform_18, window_bounds = array<i64: 8, 32>}, {transform_indices = @transform_19, window_bounds = array<i64: 8, 16>}]} {
    %c0 = arith.constant 0 : index
    %c0_0 = arith.constant 0 : index
    %0 = vector.load %arg1[%c0, %c0_0] : memref<8x16xf32, #tpu.memory_space<vmem>>, vector<8x16xf32>
    %c0_1 = arith.constant 0 : index
    %c0_2 = arith.constant 0 : index
    %1 = vector.load %arg2[%c0_1, %c0_2] : memref<8x3xf32, #tpu.memory_space<vmem>>, vector<8x3xf32>
    %2 = arith.truncf %0 : vector<8x16xf32> to vector<8x16xbf16>
    %c0_3 = arith.constant 0 : index
    %c0_4 = arith.constant 0 : index
    %3 = vector.load %arg4[%c0_3, %c0_4] : memref<16x32xbf16, #tpu.memory_space<vmem>>, vector<16x32xbf16>
    %cst = arith.constant dense<0.000000e+00> : vector<8x32xf32>
    %4 = tpu.matmul %2, %3, %cst {dimension_numbers = #tpu.dot_dimension_numbers<[1], [0], [0], [1], [0, 0, 1, 1], [], []>} : vector<8x16xbf16>, vector<16x32xbf16>, vector<8x32xf32> -> vector<8x32xf32>
    %c0_5 = arith.constant 0 : index
    %c0_6 = arith.constant 0 : index
    %5 = vector.load %arg5[%c0_5, %c0_6] : memref<1x32xf32, #tpu.memory_space<vmem>>, vector<1x32xf32>
    %6 = vector.broadcast %5 : vector<1x32xf32> to vector<8x32xf32>
    %7 = arith.addf %4, %6 : vector<8x32xf32>
    %cst_7 = arith.constant 0.000000e+00 : f32
    %8 = vector.broadcast %cst_7 : f32 to vector<8x32xf32>
    %9 = arith.maximumf %7, %8 : vector<8x32xf32>
    %10 = arith.truncf %9 : vector<8x32xf32> to vector<8x32xbf16>
    %c0_8 = arith.constant 0 : index
    %c0_9 = arith.constant 0 : index
    %11 = vector.load %arg6[%c0_8, %c0_9] : memref<32x16xbf16, #tpu.memory_space<vmem>>, vector<32x16xbf16>
    %cst_10 = arith.constant dense<0.000000e+00> : vector<8x16xf32>
    %12 = tpu.matmul %10, %11, %cst_10 {dimension_numbers = #tpu.dot_dimension_numbers<[1], [0], [0], [1], [0, 0, 1, 1], [], []>} : vector<8x32xbf16>, vector<32x16xbf16>, vector<8x16xf32> -> vector<8x16xf32>
    %c0_11 = arith.constant 0 : index
    %c0_12 = arith.constant 0 : index
    %13 = vector.load %arg7[%c0_11, %c0_12] : memref<1x16xf32, #tpu.memory_space<vmem>>, vector<1x16xf32>
    %14 = vector.broadcast %13 : vector<1x16xf32> to vector<8x16xf32>
    %15 = arith.addf %12, %14 : vector<8x16xf32>
    %cst_13 = arith.constant 0.000000e+00 : f32
    %16 = vector.broadcast %cst_13 : f32 to vector<8x16xf32>
    %17 = arith.maximumf %15, %16 : vector<8x16xf32>
    %cst_14 = arith.constant dense<0xFF800000> : vector<8xf32>
    %18 = vector.multi_reduction <maximumf>, %1, %cst_14 [1] : vector<8x3xf32> to vector<8xf32>
    %19 = vector.shape_cast %18 : vector<8xf32> to vector<8x1xf32>
    %20 = tpu.iota {dimensions = array<i32: 1>} : vector<8x3xi32>
    %21 = vector.broadcast %19 : vector<8x1xf32> to vector<8x3xf32>
    %22 = arith.cmpf oeq, %1, %21 : vector<8x3xf32>
    %c3_i32 = arith.constant 3 : i32
    %23 = vector.broadcast %c3_i32 : i32 to vector<8x3xi32>
    %24 = arith.select %22, %20, %23 : vector<8x3xi1>, vector<8x3xi32>
    %cst_15 = arith.constant dense<2147483647> : vector<8xi32>
    %25 = vector.multi_reduction <minsi>, %24, %cst_15 [1] : vector<8x3xi32> to vector<8xi32>
    %26 = vector.shape_cast %25 : vector<8xi32> to vector<8x1xi32>
    %27 = arith.truncf %17 : vector<8x16xf32> to vector<8x16xbf16>
    %c0_16 = arith.constant 0 : index
    %c0_17 = arith.constant 0 : index
    %28 = vector.load %arg8[%c0_16, %c0_17] : memref<16x48xbf16, #tpu.memory_space<vmem>>, vector<16x48xbf16>
    %cst_18 = arith.constant dense<0.000000e+00> : vector<8x48xf32>
    %29 = tpu.matmul %27, %28, %cst_18 {dimension_numbers = #tpu.dot_dimension_numbers<[1], [0], [0], [1], [0, 0, 1, 1], [], []>} : vector<8x16xbf16>, vector<16x48xbf16>, vector<8x48xf32> -> vector<8x48xf32>
    %30 = arith.truncf %1 : vector<8x3xf32> to vector<8x3xbf16>
    %c0_19 = arith.constant 0 : index
    %c0_20 = arith.constant 0 : index
    %31 = vector.load %arg9[%c0_19, %c0_20] : memref<3x48xbf16, #tpu.memory_space<vmem>>, vector<3x48xbf16>
    %cst_21 = arith.constant dense<0.000000e+00> : vector<8x48xf32>
    %32 = tpu.matmul %30, %31, %cst_21 {dimension_numbers = #tpu.dot_dimension_numbers<[1], [0], [0], [1], [0, 0, 1, 1], [], []>} : vector<8x3xbf16>, vector<3x48xbf16>, vector<8x48xf32> -> vector<8x48xf32>
    %33 = arith.addf %29, %32 : vector<8x48xf32>
    %c0_22 = arith.constant 0 : index
    %c0_23 = arith.constant 0 : index
    %34 = vector.load %arg10[%c0_22, %c0_23] : memref<1x48xf32, #tpu.memory_space<vmem>>, vector<1x48xf32>
    %35 = vector.broadcast %34 : vector<1x48xf32> to vector<8x48xf32>
    %36 = arith.addf %33, %35 : vector<8x48xf32>
    %cst_24 = arith.constant 0.000000e+00 : f32
    %37 = vector.broadcast %cst_24 : f32 to vector<8x48xf32>
    %38 = arith.maximumf %36, %37 : vector<8x48xf32>
    %39 = vector.shape_cast %26 : vector<8x1xi32> to vector<8x1xi32>
    %40 = vector.broadcast %39 : vector<8x1xi32> to vector<8x16xi32>
    %cst_25 = arith.constant 0.000000e+00 : f32
    %41 = vector.broadcast %cst_25 : f32 to vector<8x16xf32>
    %c0_i32 = arith.constant 0 : i32
    %42 = vector.broadcast %c0_i32 : i32 to vector<8x16xi32>
    %43 = arith.cmpi eq, %40, %42 : vector<8x16xi32>
    %c0_26 = arith.constant 0 : index
    %44 = memref.load %arg3[%c0_26] : memref<3xi32, #tpu.memory_space<smem>>
    %c0_i32_27 = arith.constant 0 : i32
    %45 = arith.cmpi sgt, %44, %c0_i32_27 : i32
    %46 = vector.broadcast %45 : i1 to vector<8x16xi1>
    %47 = arith.andi %43, %46 : vector<8x16xi1>
    %48 = vector.extract_strided_slice %38 {offsets = [0, 0], sizes = [8, 16], strides = [1, 1]} : vector<8x48xf32> to vector<8x16xf32>
    %cst_28 = arith.constant 0.000000e+00 : f32
    %49 = vector.broadcast %cst_28 : f32 to vector<8x16xf32>
    %50 = arith.select %47, %48, %49 : vector<8x16xi1>, vector<8x16xf32>
    %51 = arith.addf %41, %50 : vector<8x16xf32>
    %c1_i32 = arith.constant 1 : i32
    %52 = vector.broadcast %c1_i32 : i32 to vector<8x16xi32>
    %53 = arith.cmpi eq, %40, %52 : vector<8x16xi32>
    %c1 = arith.constant 1 : index
    %54 = memref.load %arg3[%c1] : memref<3xi32, #tpu.memory_space<smem>>
    %c0_i32_29 = arith.constant 0 : i32
    %55 = arith.cmpi sgt, %54, %c0_i32_29 : i32
    %56 = vector.broadcast %55 : i1 to vector<8x16xi1>
    %57 = arith.andi %53, %56 : vector<8x16xi1>
    %58 = vector.extract_strided_slice %38 {offsets = [0, 16], sizes = [8, 16], strides = [1, 1]} : vector<8x48xf32> to vector<8x16xf32>
    %cst_30 = arith.constant 0.000000e+00 : f32
    %59 = vector.broadcast %cst_30 : f32 to vector<8x16xf32>
    %60 = arith.select %57, %58, %59 : vector<8x16xi1>, vector<8x16xf32>
    %61 = arith.addf %51, %60 : vector<8x16xf32>
    %c2_i32 = arith.constant 2 : i32
    %62 = vector.broadcast %c2_i32 : i32 to vector<8x16xi32>
    %63 = arith.cmpi eq, %40, %62 : vector<8x16xi32>
    %c2 = arith.constant 2 : index
    %64 = memref.load %arg3[%c2] : memref<3xi32, #tpu.memory_space<smem>>
    %c0_i32_31 = arith.constant 0 : i32
    %65 = arith.cmpi sgt, %64, %c0_i32_31 : i32
    %66 = vector.broadcast %65 : i1 to vector<8x16xi1>
    %67 = arith.andi %63, %66 : vector<8x16xi1>
    %68 = vector.extract_strided_slice %38 {offsets = [0, 32], sizes = [8, 16], strides = [1, 1]} : vector<8x48xf32> to vector<8x16xf32>
    %cst_32 = arith.constant 0.000000e+00 : f32
    %69 = vector.broadcast %cst_32 : f32 to vector<8x16xf32>
    %70 = arith.select %67, %68, %69 : vector<8x16xi1>, vector<8x16xf32>
    %71 = arith.addf %61, %70 : vector<8x16xf32>
    %c0_33 = arith.constant 0 : index
    %c0_34 = arith.constant 0 : index
    %72 = vector.load %arg20[%c0_33, %c0_34] : memref<8x16xf32, #tpu.memory_space<vmem>>, vector<8x16xf32>
    tpu.vector_store %arg20[%c0_33, %c0_34], %71 {strides = array<i32>} : memref<8x16xf32, #tpu.memory_space<vmem>>, vector<8x16xf32>,
    %73 = arith.truncf %71 : vector<8x16xf32> to vector<8x16xbf16>
    %c0_35 = arith.constant 0 : index
    %c0_36 = arith.constant 0 : index
    %74 = vector.load %arg11[%c0_35, %c0_36] : memref<16x24xbf16, #tpu.memory_space<vmem>>, vector<16x24xbf16>
    %cst_37 = arith.constant dense<0.000000e+00> : vector<8x24xf32>
    %75 = tpu.matmul %73, %74, %cst_37 {dimension_numbers = #tpu.dot_dimension_numbers<[1], [0], [0], [1], [0, 0, 1, 1], [], []>} : vector<8x16xbf16>, vector<16x24xbf16>, vector<8x24xf32> -> vector<8x24xf32>
    %c0_38 = arith.constant 0 : index
    %c0_39 = arith.constant 0 : index
    %76 = vector.load %arg12[%c0_38, %c0_39] : memref<1x24xf32, #tpu.memory_space<vmem>>, vector<1x24xf32>
    %77 = vector.broadcast %76 : vector<1x24xf32> to vector<8x24xf32>
    %78 = arith.addf %75, %77 : vector<8x24xf32>
    %cst_40 = arith.constant 0.000000e+00 : f32
    %79 = vector.broadcast %cst_40 : f32 to vector<8x24xf32>
    %80 = arith.maximumf %78, %79 : vector<8x24xf32>
    %81 = arith.truncf %80 : vector<8x24xf32> to vector<8x24xbf16>
    %c0_41 = arith.constant 0 : index
    %c0_42 = arith.constant 0 : index
    %82 = vector.load %arg13[%c0_41, %c0_42] : memref<24x32xbf16, #tpu.memory_space<vmem>>, vector<24x32xbf16>
    %cst_43 = arith.constant dense<0.000000e+00> : vector<8x32xf32>
    %83 = tpu.matmul %81, %82, %cst_43 {dimension_numbers = #tpu.dot_dimension_numbers<[1], [0], [0], [1], [0, 0, 1, 1], [], []>} : vector<8x24xbf16>, vector<24x32xbf16>, vector<8x32xf32> -> vector<8x32xf32>
    %c0_44 = arith.constant 0 : index
    %c0_45 = arith.constant 0 : index
    %84 = vector.load %arg14[%c0_44, %c0_45] : memref<1x32xf32, #tpu.memory_space<vmem>>, vector<1x32xf32>
    %85 = vector.broadcast %84 : vector<1x32xf32> to vector<8x32xf32>
    %86 = arith.addf %83, %85 : vector<8x32xf32>
    %cst_46 = arith.constant 0.000000e+00 : f32
    %87 = vector.broadcast %cst_46 : f32 to vector<8x32xf32>
    %88 = arith.maximumf %86, %87 : vector<8x32xf32>
    %89 = arith.truncf %88 : vector<8x32xf32> to vector<8x32xbf16>
    %c0_47 = arith.constant 0 : index
    %c0_48 = arith.constant 0 : index
    %90 = vector.load %arg15[%c0_47, %c0_48] : memref<32x16xbf16, #tpu.memory_space<vmem>>, vector<32x16xbf16>
    %cst_49 = arith.constant dense<0.000000e+00> : vector<8x16xf32>
    %91 = tpu.matmul %89, %90, %cst_49 {dimension_numbers = #tpu.dot_dimension_numbers<[1], [0], [0], [1], [0, 0, 1, 1], [], []>} : vector<8x32xbf16>, vector<32x16xbf16>, vector<8x16xf32> -> vector<8x16xf32>
    %c0_50 = arith.constant 0 : index
    %c0_51 = arith.constant 0 : index
    %92 = vector.load %arg16[%c0_50, %c0_51] : memref<1x16xf32, #tpu.memory_space<vmem>>, vector<1x16xf32>
    %93 = vector.broadcast %92 : vector<1x16xf32> to vector<8x16xf32>
    %94 = arith.addf %91, %93 : vector<8x16xf32>
    %c0_52 = arith.constant 0 : index
    %c0_53 = arith.constant 0 : index
    %95 = vector.load %arg17[%c0_52, %c0_53] : memref<32x16xbf16, #tpu.memory_space<vmem>>, vector<32x16xbf16>
    %cst_54 = arith.constant dense<0.000000e+00> : vector<8x16xf32>
    %96 = tpu.matmul %89, %95, %cst_54 {dimension_numbers = #tpu.dot_dimension_numbers<[1], [0], [0], [1], [0, 0, 1, 1], [], []>} : vector<8x32xbf16>, vector<32x16xbf16>, vector<8x16xf32> -> vector<8x16xf32>
    %c0_55 = arith.constant 0 : index
    %c0_56 = arith.constant 0 : index
    %97 = vector.load %arg18[%c0_55, %c0_56] : memref<1x16xf32, #tpu.memory_space<vmem>>, vector<1x16xf32>
    %98 = vector.broadcast %97 : vector<1x16xf32> to vector<8x16xf32>
    %99 = arith.addf %96, %98 : vector<8x16xf32>
    %cst_57 = arith.constant 0.000000e+00 : f32
    %100 = vector.broadcast %cst_57 : f32 to vector<8x16xf32>
    %101 = arith.maximumf %99, %100 : vector<8x16xf32>
    %102 = math.absf %99 : vector<8x16xf32>
    %cst_58 = arith.constant 0.000000e+00 : f32
    %103 = vector.broadcast %cst_58 : f32 to vector<8x16xf32>
    %104 = arith.subf %103, %102 : vector<8x16xf32>
    %105 = math.exp %104 : vector<8x16xf32>
    %106 = math.log1p %105 : vector<8x16xf32>
    %107 = arith.addf %101, %106 : vector<8x16xf32>
    %c0_59 = arith.constant 0 : index
    %c0_60 = arith.constant 0 : index
    %108 = vector.load %arg19[%c0_59, %c0_60] : memref<8x32xf32, #tpu.memory_space<vmem>>, vector<8x16xf32>
    tpu.vector_store %arg19[%c0_59, %c0_60], %94 {strides = array<i32>} : memref<8x32xf32, #tpu.memory_space<vmem>>, vector<8x16xf32>,
    %cst_61 = arith.constant 1.000000e-03 : f32
    %109 = vector.broadcast %cst_61 : f32 to vector<8x16xf32>
    %110 = arith.addf %107, %109 : vector<8x16xf32>
    %c0_62 = arith.constant 0 : index
    %c16 = arith.constant 16 : index
    %111 = vector.load %arg19[%c0_62, %c16] : memref<8x32xf32, #tpu.memory_space<vmem>>, vector<8x16xf32>
    tpu.vector_store %arg19[%c0_62, %c16], %110 {strides = array<i32>} : memref<8x32xf32, #tpu.memory_space<vmem>>, vector<8x16xf32>,
    return
  }
  func.func @transform_0(%arg0: i32) -> (i32, i32) {
    %c0_i32 = arith.constant 0 : i32
    %c0_i32_0 = arith.constant 0 : i32
    return %arg0, %c0_i32 : i32, i32
  }
  func.func @transform_1(%arg0: i32) -> (i32, i32) {
    %c0_i32 = arith.constant 0 : i32
    %c0_i32_0 = arith.constant 0 : i32
    return %arg0, %c0_i32 : i32, i32
  }
  func.func @transform_2(%arg0: i32) -> i32 {
    %c0_i32 = arith.constant 0 : i32
    %c0_i32_0 = arith.constant 0 : i32
    return %c0_i32 : i32
  }
  func.func @transform_3(%arg0: i32) -> (i32, i32) {
    %c0_i32 = arith.constant 0 : i32
    %c0_i32_0 = arith.constant 0 : i32
    %c0_i32_1 = arith.constant 0 : i32
    return %c0_i32, %c0_i32_0 : i32, i32
  }
  func.func @transform_4(%arg0: i32) -> (i32, i32) {
    %c0_i32 = arith.constant 0 : i32
    %c0_i32_0 = arith.constant 0 : i32
    %c0_i32_1 = arith.constant 0 : i32
    return %c0_i32, %c0_i32_0 : i32, i32
  }
  func.func @transform_5(%arg0: i32) -> (i32, i32) {
    %c0_i32 = arith.constant 0 : i32
    %c0_i32_0 = arith.constant 0 : i32
    %c0_i32_1 = arith.constant 0 : i32
    return %c0_i32, %c0_i32_0 : i32, i32
  }
  func.func @transform_6(%arg0: i32) -> (i32, i32) {
    %c0_i32 = arith.constant 0 : i32
    %c0_i32_0 = arith.constant 0 : i32
    %c0_i32_1 = arith.constant 0 : i32
    return %c0_i32, %c0_i32_0 : i32, i32
  }
  func.func @transform_7(%arg0: i32) -> (i32, i32) {
    %c0_i32 = arith.constant 0 : i32
    %c0_i32_0 = arith.constant 0 : i32
    %c0_i32_1 = arith.constant 0 : i32
    return %c0_i32, %c0_i32_0 : i32, i32
  }
  func.func @transform_8(%arg0: i32) -> (i32, i32) {
    %c0_i32 = arith.constant 0 : i32
    %c0_i32_0 = arith.constant 0 : i32
    %c0_i32_1 = arith.constant 0 : i32
    return %c0_i32, %c0_i32_0 : i32, i32
  }
  func.func @transform_9(%arg0: i32) -> (i32, i32) {
    %c0_i32 = arith.constant 0 : i32
    %c0_i32_0 = arith.constant 0 : i32
    %c0_i32_1 = arith.constant 0 : i32
    return %c0_i32, %c0_i32_0 : i32, i32
  }
  func.func @transform_10(%arg0: i32) -> (i32, i32) {
    %c0_i32 = arith.constant 0 : i32
    %c0_i32_0 = arith.constant 0 : i32
    %c0_i32_1 = arith.constant 0 : i32
    return %c0_i32, %c0_i32_0 : i32, i32
  }
  func.func @transform_11(%arg0: i32) -> (i32, i32) {
    %c0_i32 = arith.constant 0 : i32
    %c0_i32_0 = arith.constant 0 : i32
    %c0_i32_1 = arith.constant 0 : i32
    return %c0_i32, %c0_i32_0 : i32, i32
  }
  func.func @transform_12(%arg0: i32) -> (i32, i32) {
    %c0_i32 = arith.constant 0 : i32
    %c0_i32_0 = arith.constant 0 : i32
    %c0_i32_1 = arith.constant 0 : i32
    return %c0_i32, %c0_i32_0 : i32, i32
  }
  func.func @transform_13(%arg0: i32) -> (i32, i32) {
    %c0_i32 = arith.constant 0 : i32
    %c0_i32_0 = arith.constant 0 : i32
    %c0_i32_1 = arith.constant 0 : i32
    return %c0_i32, %c0_i32_0 : i32, i32
  }
  func.func @transform_14(%arg0: i32) -> (i32, i32) {
    %c0_i32 = arith.constant 0 : i32
    %c0_i32_0 = arith.constant 0 : i32
    %c0_i32_1 = arith.constant 0 : i32
    return %c0_i32, %c0_i32_0 : i32, i32
  }
  func.func @transform_15(%arg0: i32) -> (i32, i32) {
    %c0_i32 = arith.constant 0 : i32
    %c0_i32_0 = arith.constant 0 : i32
    %c0_i32_1 = arith.constant 0 : i32
    return %c0_i32, %c0_i32_0 : i32, i32
  }
  func.func @transform_16(%arg0: i32) -> (i32, i32) {
    %c0_i32 = arith.constant 0 : i32
    %c0_i32_0 = arith.constant 0 : i32
    %c0_i32_1 = arith.constant 0 : i32
    return %c0_i32, %c0_i32_0 : i32, i32
  }
  func.func @transform_17(%arg0: i32) -> (i32, i32) {
    %c0_i32 = arith.constant 0 : i32
    %c0_i32_0 = arith.constant 0 : i32
    %c0_i32_1 = arith.constant 0 : i32
    return %c0_i32, %c0_i32_0 : i32, i32
  }
  func.func @transform_18(%arg0: i32) -> (i32, i32) {
    %c0_i32 = arith.constant 0 : i32
    %c0_i32_0 = arith.constant 0 : i32
    return %arg0, %c0_i32 : i32, i32
  }
  func.func @transform_19(%arg0: i32) -> (i32, i32) {
    %c0_i32 = arith.constant 0 : i32
    %c0_i32_0 = arith.constant 0 : i32
    return %arg0, %c0_i32 : i32, i32
  }
}

module attributes {stable_mosaic.version = 11 : i64} {
  func.func @codex_dose_kernel(%arg0: i32, %arg1: memref<8x16xf32, #tpu.memory_space<vmem>>, %arg2: memref<8x3xf32, #tpu.memory_space<vmem>>, %arg3: memref<3xi32, #tpu.memory_space<smem>>, %arg4: memref<16x32xbf16, #tpu.memory_space<vmem>>, %arg5: memref<1x32xf32, #tpu.memory_space<vmem>>, %arg6: memref<32x16xbf16, #tpu.memory_space<vmem>>, %arg7: memref<1x16xf32, #tpu.memory_space<vmem>>, %arg8: memref<16x48xbf16, #tpu.memory_space<vmem>>, %arg9: memref<3x48xbf16, #tpu.memory_space<vmem>>, %arg10: memref<1x48xf32, #tpu.memory_space<vmem>>, %arg11: memref<16x24xbf16, #tpu.memory_space<vmem>>, %arg12: memref<1x24xf32, #tpu.memory_space<vmem>>, %arg13: memref<24x32xbf16, #tpu.memory_space<vmem>>, %arg14: memref<1x32xf32, #tpu.memory_space<vmem>>, %arg15: memref<32x16xbf16, #tpu.memory_space<vmem>>, %arg16: memref<1x16xf32, #tpu.memory_space<vmem>>, %arg17: memref<32x16xbf16, #tpu.memory_space<vmem>>, %arg18: memref<1x16xf32, #tpu.memory_space<vmem>>, %arg19: memref<8x32xf32, #tpu.memory_space<vmem>>, %arg20: memref<8x16xf32, #tpu.memory_space<vmem>>) attributes {dimension_semantics = [#tpu.dimension_semantics<parallel>], iteration_bounds = array<i64: 1>, scalar_prefetch = 0 : i64, scratch_operands = 0 : i64, tpu.core_type = #tpu.core_type<tc>, window_params = [{transform_indices = @transform_0, window_bounds = array<i64: 8, 16>}, {transform_indices = @transform_1, window_bounds = array<i64: 8, 3>}, {transform_indices = @transform_2, window_bounds = array<i64: 3>}, {pipeline_mode = #tpu.pipeline_mode<synchronous>, transform_indices = @transform_3, window_bounds = array<i64: 16, 32>}, {pipeline_mode = #tpu.pipeline_mode<synchronous>, transform_indices = @transform_4, window_bounds = array<i64: 1, 32>}, {pipeline_mode = #tpu.pipeline_mode<synchronous>, transform_indices = @transform_5, window_bounds = array<i64: 32, 16>}, {pipeline_mode = #tpu.pipeline_mode<synchronous>, transform_indices = @transform_6, window_bounds = array<i64: 1, 16>}, {pipeline_mode = #tpu.pipeline_mode<synchronous>, transform_indices = @transform_7, window_bounds = array<i64: 16, 48>}, {pipeline_mode = #tpu.pipeline_mode<synchronous>, transform_indices = @transform_8, window_bounds = array<i64: 3, 48>}, {pipeline_mode = #tpu.pipeline_mode<synchronous>, transform_indices = @transform_9, window_bounds = array<i64: 1, 48>}, {pipeline_mode = #tpu.pipeline_mode<synchronous>, transform_indices = @transform_10, window_bounds = array<i64: 16, 24>}, {pipeline_mode = #tpu.pipeline_mode<synchronous>, transform_indices = @transform_11, window_bounds = array<i64: 1, 24>}, {pipeline_mode = #tpu.pipeline_mode<synchronous>, transform_indices = @transform_12, window_bounds = array<i64: 24, 32>}, {pipeline_mode = #tpu.pipeline_mode<synchronous>, transform_indices = @transform_13, window_bounds = array<i64: 1, 32>}, {pipeline_mode = #tpu.pipeline_mode<synchronous>, transform_indices = @transform_14, window_bounds = array<i64: 32, 16>}, {pipeline_mode = #tpu.pipeline_mode<synchronous>, transform_indices = @transform_15, window_bounds = array<i64: 1, 16>}, {pipeline_mode = #tpu.pipeline_mode<synchronous>, transform_indices = @transform_16, window_bounds = array<i64: 32, 16>}, {pipeline_mode = #tpu.pipeline_mode<synchronous>, transform_indices = @transform_17, window_bounds = array<i64: 1, 16>}, {transform_indices = @transform_18, window_bounds = array<i64: 8, 32>}, {transform_indices = @transform_19, window_bounds = array<i64: 8, 16>}]} {
    %c0 = arith.constant 0 : index
    %c0_0 = arith.constant 0 : index
    %0 = vector.load %arg1[%c0, %c0_0] : memref<8x16xf32, #tpu.memory_space<vmem>>, vector<8x16xf32>
    %c0_1 = arith.constant 0 : index
    %c0_2 = arith.constant 0 : index
    %1 = vector.load %arg2[%c0_1, %c0_2] : memref<8x3xf32, #tpu.memory_space<vmem>>, vector<8x3xf32>
    %2 = arith.truncf %0 : vector<8x16xf32> to vector<8x16xbf16>
    %c0_3 = arith.constant 0 : index
    %c0_4 = arith.constant 0 : index
    %3 = vector.load %arg4[%c0_3, %c0_4] : memref<16x32xbf16, #tpu.memory_space<vmem>>, vector<16x32xbf16>
    %cst = arith.constant dense<0.000000e+00> : vector<8x32xf32>
    %4 = tpu.matmul %2, %3, %cst {dimension_numbers = #tpu.dot_dimension_numbers<[1], [0], [0], [1], [0, 0, 1, 1], [], []>} : vector<8x16xbf16>, vector<16x32xbf16>, vector<8x32xf32> -> vector<8x32xf32>
    %c0_5 = arith.constant 0 : index
    %c0_6 = arith.constant 0 : index
    %5 = vector.load %arg5[%c0_5, %c0_6] : memref<1x32xf32, #tpu.memory_space<vmem>>, vector<1x32xf32>
    %6 = vector.broadcast %5 : vector<1x32xf32> to vector<8x32xf32>
    %7 = arith.addf %4, %6 : vector<8x32xf32>
    %cst_7 = arith.constant 0.000000e+00 : f32
    %8 = vector.broadcast %cst_7 : f32 to vector<8x32xf32>
    %9 = arith.maximumf %7, %8 : vector<8x32xf32>
    %10 = arith.truncf %9 : vector<8x32xf32> to vector<8x32xbf16>
    %c0_8 = arith.constant 0 : index
    %c0_9 = arith.constant 0 : index
    %11 = vector.load %arg6[%c0_8, %c0_9] : memref<32x16xbf16, #tpu.memory_space<vmem>>, vector<32x16xbf16>
    %cst_10 = arith.constant dense<0.000000e+00> : vector<8x16xf32>
    %12 = tpu.matmul %10, %11, %cst_10 {dimension_numbers = #tpu.dot_dimension_numbers<[1], [0], [0], [1], [0, 0, 1, 1], [], []>} : vector<8x32xbf16>, vector<32x16xbf16>, vector<8x16xf32> -> vector<8x16xf32>
    %c0_11 = arith.constant 0 : index
    %c0_12 = arith.constant 0 : index
    %13 = vector.load %arg7[%c0_11, %c0_12] : memref<1x16xf32, #tpu.memory_space<vmem>>, vector<1x16xf32>
    %14 = vector.broadcast %13 : vector<1x16xf32> to vector<8x16xf32>
    %15 = arith.addf %12, %14 : vector<8x16xf32>
    %cst_13 = arith.constant 0.000000e+00 : f32
    %16 = vector.broadcast %cst_13 : f32 to vector<8x16xf32>
    %17 = arith.maximumf %15, %16 : vector<8x16xf32>
    %cst_14 = arith.constant dense<0xFF800000> : vector<8xf32>
    %18 = vector.multi_reduction <maximumf>, %1, %cst_14 [1] : vector<8x3xf32> to vector<8xf32>
    %19 = vector.shape_cast %18 : vector<8xf32> to vector<8x1xf32>
    %20 = tpu.iota {dimensions = array<i32: 1>} : vector<8x3xi32>
    %21 = vector.broadcast %19 : vector<8x1xf32> to vector<8x3xf32>
    %22 = arith.cmpf oeq, %1, %21 : vector<8x3xf32>
    %c3_i32 = arith.constant 3 : i32
    %23 = vector.broadcast %c3_i32 : i32 to vector<8x3xi32>
    %24 = arith.select %22, %20, %23 : vector<8x3xi1>, vector<8x3xi32>
    %cst_15 = arith.constant dense<2147483647> : vector<8xi32>
    %25 = vector.multi_reduction <minsi>, %24, %cst_15 [1] : vector<8x3xi32> to vector<8xi32>
    %26 = vector.shape_cast %25 : vector<8xi32> to vector<8x1xi32>
    %27 = arith.truncf %17 : vector<8x16xf32> to vector<8x16xbf16>
    %c0_16 = arith.constant 0 : index
    %c0_17 = arith.constant 0 : index
    %28 = vector.load %arg8[%c0_16, %c0_17] : memref<16x48xbf16, #tpu.memory_space<vmem>>, vector<16x48xbf16>
    %cst_18 = arith.constant dense<0.000000e+00> : vector<8x48xf32>
    %29 = tpu.matmul %27, %28, %cst_18 {dimension_numbers = #tpu.dot_dimension_numbers<[1], [0], [0], [1], [0, 0, 1, 1], [], []>} : vector<8x16xbf16>, vector<16x48xbf16>, vector<8x48xf32> -> vector<8x48xf32>
    %30 = arith.truncf %1 : vector<8x3xf32> to vector<8x3xbf16>
    %c0_19 = arith.constant 0 : index
    %c0_20 = arith.constant 0 : index
    %31 = vector.load %arg9[%c0_19, %c0_20] : memref<3x48xbf16, #tpu.memory_space<vmem>>, vector<3x48xbf16>
    %cst_21 = arith.constant dense<0.000000e+00> : vector<8x48xf32>
    %32 = tpu.matmul %30, %31, %cst_21 {dimension_numbers = #tpu.dot_dimension_numbers<[1], [0], [0], [1], [0, 0, 1, 1], [], []>} : vector<8x3xbf16>, vector<3x48xbf16>, vector<8x48xf32> -> vector<8x48xf32>
    %33 = arith.addf %29, %32 : vector<8x48xf32>
    %c0_22 = arith.constant 0 : index
    %c0_23 = arith.constant 0 : index
    %34 = vector.load %arg10[%c0_22, %c0_23] : memref<1x48xf32, #tpu.memory_space<vmem>>, vector<1x48xf32>
    %35 = vector.broadcast %34 : vector<1x48xf32> to vector<8x48xf32>
    %36 = arith.addf %33, %35 : vector<8x48xf32>
    %cst_24 = arith.constant 0.000000e+00 : f32
    %37 = vector.broadcast %cst_24 : f32 to vector<8x48xf32>
    %38 = arith.maximumf %36, %37 : vector<8x48xf32>
    %39 = vector.shape_cast %26 : vector<8x1xi32> to vector<8x1xi32>
    %40 = vector.broadcast %39 : vector<8x1xi32> to vector<8x16xi32>
    %cst_25 = arith.constant 0.000000e+00 : f32
    %41 = vector.broadcast %cst_25 : f32 to vector<8x16xf32>
    %c0_i32 = arith.constant 0 : i32
    %42 = vector.broadcast %c0_i32 : i32 to vector<8x16xi32>
    %43 = arith.cmpi eq, %40, %42 : vector<8x16xi32>
    %c0_26 = arith.constant 0 : index
    %44 = memref.load %arg3[%c0_26] : memref<3xi32, #tpu.memory_space<smem>>
    %c0_i32_27 = arith.constant 0 : i32
    %45 = arith.cmpi sgt, %44, %c0_i32_27 : i32
    %46 = vector.broadcast %45 : i1 to vector<8x16xi1>
    %47 = arith.andi %43, %46 : vector<8x16xi1>
    %48 = vector.extract_strided_slice %38 {offsets = [0, 0], sizes = [8, 16], strides = [1, 1]} : vector<8x48xf32> to vector<8x16xf32>
    %cst_28 = arith.constant 0.000000e+00 : f32
    %49 = vector.broadcast %cst_28 : f32 to vector<8x16xf32>
    %50 = arith.select %47, %48, %49 : vector<8x16xi1>, vector<8x16xf32>
    %51 = arith.addf %41, %50 : vector<8x16xf32>
    %c1_i32 = arith.constant 1 : i32
    %52 = vector.broadcast %c1_i32 : i32 to vector<8x16xi32>
    %53 = arith.cmpi eq, %40, %52 : vector<8x16xi32>
    %c1 = arith.constant 1 : index
    %54 = memref.load %arg3[%c1] : memref<3xi32, #tpu.memory_space<smem>>
    %c0_i32_29 = arith.constant 0 : i32
    %55 = arith.cmpi sgt, %54, %c0_i32_29 : i32
    %56 = vector.broadcast %55 : i1 to vector<8x16xi1>
    %57 = arith.andi %53, %56 : vector<8x16xi1>
    %58 = vector.extract_strided_slice %38 {offsets = [0, 16], sizes = [8, 16], strides = [1, 1]} : vector<8x48xf32> to vector<8x16xf32>
    %cst_30 = arith.constant 0.000000e+00 : f32
    %59 = vector.broadcast %cst_30 : f32 to vector<8x16xf32>
    %60 = arith.select %57, %58, %59 : vector<8x16xi1>, vector<8x16xf32>
    %61 = arith.addf %51, %60 : vector<8x16xf32>
    %c2_i32 = arith.constant 2 : i32
    %62 = vector.broadcast %c2_i32 : i32 to vector<8x16xi32>
    %63 = arith.cmpi eq, %40, %62 : vector<8x16xi32>
    %c2 = arith.constant 2 : index
    %64 = memref.load %arg3[%c2] : memref<3xi32, #tpu.memory_space<smem>>
    %c0_i32_31 = arith.constant 0 : i32
    %65 = arith.cmpi sgt, %64, %c0_i32_31 : i32
    %66 = vector.broadcast %65 : i1 to vector<8x16xi1>
    %67 = arith.andi %63, %66 : vector<8x16xi1>
    %68 = vector.extract_strided_slice %38 {offsets = [0, 32], sizes = [8, 16], strides = [1, 1]} : vector<8x48xf32> to vector<8x16xf32>
    %cst_32 = arith.constant 0.000000e+00 : f32
    %69 = vector.broadcast %cst_32 : f32 to vector<8x16xf32>
    %70 = arith.select %67, %68, %69 : vector<8x16xi1>, vector<8x16xf32>
    %71 = arith.addf %61, %70 : vector<8x16xf32>
    %c0_33 = arith.constant 0 : index
    %c0_34 = arith.constant 0 : index
    %72 = vector.load %arg20[%c0_33, %c0_34] : memref<8x16xf32, #tpu.memory_space<vmem>>, vector<8x16xf32>
    tpu.vector_store %arg20[%c0_33, %c0_34], %71 {strides = array<i32>} : memref<8x16xf32, #tpu.memory_space<vmem>>, vector<8x16xf32>,
    %73 = arith.truncf %71 : vector<8x16xf32> to vector<8x16xbf16>
    %c0_35 = arith.constant 0 : index
    %c0_36 = arith.constant 0 : index
    %74 = vector.load %arg11[%c0_35, %c0_36] : memref<16x24xbf16, #tpu.memory_space<vmem>>, vector<16x24xbf16>
    %cst_37 = arith.constant dense<0.000000e+00> : vector<8x24xf32>
    %75 = tpu.matmul %73, %74, %cst_37 {dimension_numbers = #tpu.dot_dimension_numbers<[1], [0], [0], [1], [0, 0, 1, 1], [], []>} : vector<8x16xbf16>, vector<16x24xbf16>, vector<8x24xf32> -> vector<8x24xf32>
    %c0_38 = arith.constant 0 : index
    %c0_39 = arith.constant 0 : index
    %76 = vector.load %arg12[%c0_38, %c0_39] : memref<1x24xf32, #tpu.memory_space<vmem>>, vector<1x24xf32>
    %77 = vector.broadcast %76 : vector<1x24xf32> to vector<8x24xf32>
    %78 = arith.addf %75, %77 : vector<8x24xf32>
    %cst_40 = arith.constant 0.000000e+00 : f32
    %79 = vector.broadcast %cst_40 : f32 to vector<8x24xf32>
    %80 = arith.maximumf %78, %79 : vector<8x24xf32>
    %81 = arith.truncf %80 : vector<8x24xf32> to vector<8x24xbf16>
    %c0_41 = arith.constant 0 : index
    %c0_42 = arith.constant 0 : index
    %82 = vector.load %arg13[%c0_41, %c0_42] : memref<24x32xbf16, #tpu.memory_space<vmem>>, vector<24x32xbf16>
    %cst_43 = arith.constant dense<0.000000e+00> : vector<8x32xf32>
    %83 = tpu.matmul %81, %82, %cst_43 {dimension_numbers = #tpu.dot_dimension_numbers<[1], [0], [0], [1], [0, 0, 1, 1], [], []>} : vector<8x24xbf16>, vector<24x32xbf16>, vector<8x32xf32> -> vector<8x32xf32>
    %c0_44 = arith.constant 0 : index
    %c0_45 = arith.constant 0 : index
    %84 = vector.load %arg14[%c0_44, %c0_45] : memref<1x32xf32, #tpu.memory_space<vmem>>, vector<1x32xf32>
    %85 = vector.broadcast %84 : vector<1x32xf32> to vector<8x32xf32>
    %86 = arith.addf %83, %85 : vector<8x32xf32>
    %cst_46 = arith.constant 0.000000e+00 : f32
    %87 = vector.broadcast %cst_46 : f32 to vector<8x32xf32>
    %88 = arith.maximumf %86, %87 : vector<8x32xf32>
    %89 = arith.truncf %88 : vector<8x32xf32> to vector<8x32xbf16>
    %c0_47 = arith.constant 0 : index
    %c0_48 = arith.constant 0 : index
    %90 = vector.load %arg15[%c0_47, %c0_48] : memref<32x16xbf16, #tpu.memory_space<vmem>>, vector<32x16xbf16>
    %cst_49 = arith.constant dense<0.000000e+00> : vector<8x16xf32>
    %91 = tpu.matmul %89, %90, %cst_49 {dimension_numbers = #tpu.dot_dimension_numbers<[1], [0], [0], [1], [0, 0, 1, 1], [], []>} : vector<8x32xbf16>, vector<32x16xbf16>, vector<8x16xf32> -> vector<8x16xf32>
    %c0_50 = arith.constant 0 : index
    %c0_51 = arith.constant 0 : index
    %92 = vector.load %arg16[%c0_50, %c0_51] : memref<1x16xf32, #tpu.memory_space<vmem>>, vector<1x16xf32>
    %93 = vector.broadcast %92 : vector<1x16xf32> to vector<8x16xf32>
    %94 = arith.addf %91, %93 : vector<8x16xf32>
    %c0_52 = arith.constant 0 : index
    %c0_53 = arith.constant 0 : index
    %95 = vector.load %arg17[%c0_52, %c0_53] : memref<32x16xbf16, #tpu.memory_space<vmem>>, vector<32x16xbf16>
    %cst_54 = arith.constant dense<0.000000e+00> : vector<8x16xf32>
    %96 = tpu.matmul %89, %95, %cst_54 {dimension_numbers = #tpu.dot_dimension_numbers<[1], [0], [0], [1], [0, 0, 1, 1], [], []>} : vector<8x32xbf16>, vector<32x16xbf16>, vector<8x16xf32> -> vector<8x16xf32>
    %c0_55 = arith.constant 0 : index
    %c0_56 = arith.constant 0 : index
    %97 = vector.load %arg18[%c0_55, %c0_56] : memref<1x16xf32, #tpu.memory_space<vmem>>, vector<1x16xf32>
    %98 = vector.broadcast %97 : vector<1x16xf32> to vector<8x16xf32>
    %99 = arith.addf %96, %98 : vector<8x16xf32>
    %cst_57 = arith.constant 0.000000e+00 : f32
    %100 = vector.broadcast %cst_57 : f32 to vector<8x16xf32>
    %101 = arith.maximumf %99, %100 : vector<8x16xf32>
    %102 = math.absf %99 : vector<8x16xf32>
    %cst_58 = arith.constant 0.000000e+00 : f32
    %103 = vector.broadcast %cst_58 : f32 to vector<8x16xf32>
    %104 = arith.subf %103, %102 : vector<8x16xf32>
    %105 = math.exp %104 : vector<8x16xf32>
    %106 = math.log1p %105 : vector<8x16xf32>
    %107 = arith.addf %101, %106 : vector<8x16xf32>
    %c0_59 = arith.constant 0 : index
    %c0_60 = arith.constant 0 : index
    %108 = vector.load %arg19[%c0_59, %c0_60] : memref<8x32xf32, #tpu.memory_space<vmem>>, vector<8x16xf32>
    tpu.vector_store %arg19[%c0_59, %c0_60], %94 {strides = array<i32>} : memref<8x32xf32, #tpu.memory_space<vmem>>, vector<8x16xf32>,
    %cst_61 = arith.constant 1.000000e-03 : f32
    %109 = vector.broadcast %cst_61 : f32 to vector<8x16xf32>
    %110 = arith.addf %107, %109 : vector<8x16xf32>
    %c0_62 = arith.constant 0 : index
    %c16 = arith.constant 16 : index
    %111 = vector.load %arg19[%c0_62, %c16] : memref<8x32xf32, #tpu.memory_space<vmem>>, vector<8x16xf32>
    tpu.vector_store %arg19[%c0_62, %c16], %110 {strides = array<i32>} : memref<8x32xf32, #tpu.memory_space<vmem>>, vector<8x16xf32>,
    return
  }
  func.func @transform_0(%arg0: i32) -> (i32, i32) {
    %c0_i32 = arith.constant 0 : i32
    %c0_i32_0 = arith.constant 0 : i32
    return %arg0, %c0_i32 : i32, i32
  }
  func.func @transform_1(%arg0: i32) -> (i32, i32) {
    %c0_i32 = arith.constant 0 : i32
    %c0_i32_0 = arith.constant 0 : i32
    return %arg0, %c0_i32 : i32, i32
  }
  func.func @transform_2(%arg0: i32) -> i32 {
    %c0_i32 = arith.constant 0 : i32
    %c0_i32_0 = arith.constant 0 : i32
    return %c0_i32 : i32
  }
  func.func @transform_3(%arg0: i32) -> (i32, i32) {
    %c0_i32 = arith.constant 0 : i32
    %c0_i32_0 = arith.constant 0 : i32
    %c0_i32_1 = arith.constant 0 : i32
    return %c0_i32, %c0_i32_0 : i32, i32
  }
  func.func @transform_4(%arg0: i32) -> (i32, i32) {
    %c0_i32 = arith.constant 0 : i32
    %c0_i32_0 = arith.constant 0 : i32
    %c0_i32_1 = arith.constant 0 : i32
    return %c0_i32, %c0_i32_0 : i32, i32
  }
  func.func @transform_5(%arg0: i32) -> (i32, i32) {
    %c0_i32 = arith.constant 0 : i32
    %c0_i32_0 = arith.constant 0 : i32
    %c0_i32_1 = arith.constant 0 : i32
    return %c0_i32, %c0_i32_0 : i32, i32
  }
  func.func @transform_6(%arg0: i32) -> (i32, i32) {
    %c0_i32 = arith.constant 0 : i32
    %c0_i32_0 = arith.constant 0 : i32
    %c0_i32_1 = arith.constant 0 : i32
    return %c0_i32, %c0_i32_0 : i32, i32
  }
  func.func @transform_7(%arg0: i32) -> (i32, i32) {
    %c0_i32 = arith.constant 0 : i32
    %c0_i32_0 = arith.constant 0 : i32
    %c0_i32_1 = arith.constant 0 : i32
    return %c0_i32, %c0_i32_0 : i32, i32
  }
  func.func @transform_8(%arg0: i32) -> (i32, i32) {
    %c0_i32 = arith.constant 0 : i32
    %c0_i32_0 = arith.constant 0 : i32
    %c0_i32_1 = arith.constant 0 : i32
    return %c0_i32, %c0_i32_0 : i32, i32
  }
  func.func @transform_9(%arg0: i32) -> (i32, i32) {
    %c0_i32 = arith.constant 0 : i32
    %c0_i32_0 = arith.constant 0 : i32
    %c0_i32_1 = arith.constant 0 : i32
    return %c0_i32, %c0_i32_0 : i32, i32
  }
  func.func @transform_10(%arg0: i32) -> (i32, i32) {
    %c0_i32 = arith.constant 0 : i32
    %c0_i32_0 = arith.constant 0 : i32
    %c0_i32_1 = arith.constant 0 : i32
    return %c0_i32, %c0_i32_0 : i32, i32
  }
  func.func @transform_11(%arg0: i32) -> (i32, i32) {
    %c0_i32 = arith.constant 0 : i32
    %c0_i32_0 = arith.constant 0 : i32
    %c0_i32_1 = arith.constant 0 : i32
    return %c0_i32, %c0_i32_0 : i32, i32
  }
  func.func @transform_12(%arg0: i32) -> (i32, i32) {
    %c0_i32 = arith.constant 0 : i32
    %c0_i32_0 = arith.constant 0 : i32
    %c0_i32_1 = arith.constant 0 : i32
    return %c0_i32, %c0_i32_0 : i32, i32
  }
  func.func @transform_13(%arg0: i32) -> (i32, i32) {
    %c0_i32 = arith.constant 0 : i32
    %c0_i32_0 = arith.constant 0 : i32
    %c0_i32_1 = arith.constant 0 : i32
    return %c0_i32, %c0_i32_0 : i32, i32
  }
  func.func @transform_14(%arg0: i32) -> (i32, i32) {
    %c0_i32 = arith.constant 0 : i32
    %c0_i32_0 = arith.constant 0 : i32
    %c0_i32_1 = arith.constant 0 : i32
    return %c0_i32, %c0_i32_0 : i32, i32
  }
  func.func @transform_15(%arg0: i32) -> (i32, i32) {
    %c0_i32 = arith.constant 0 : i32
    %c0_i32_0 = arith.constant 0 : i32
    %c0_i32_1 = arith.constant 0 : i32
    return %c0_i32, %c0_i32_0 : i32, i32
  }
  func.func @transform_16(%arg0: i32) -> (i32, i32) {
    %c0_i32 = arith.constant 0 : i32
    %c0_i32_0 = arith.constant 0 : i32
    %c0_i32_1 = arith.constant 0 : i32
    return %c0_i32, %c0_i32_0 : i32, i32
  }
  func.func @transform_17(%arg0: i32) -> (i32, i32) {
    %c0_i32 = arith.constant 0 : i32
    %c0_i32_0 = arith.constant 0 : i32
    %c0_i32_1 = arith.constant 0 : i32
    return %c0_i32, %c0_i32_0 : i32, i32
  }
  func.func @transform_18(%arg0: i32) -> (i32, i32) {
    %c0_i32 = arith.constant 0 : i32
    %c0_i32_0 = arith.constant 0 : i32
    return %arg0, %c0_i32 : i32, i32
  }
  func.func @transform_19(%arg0: i32) -> (i32, i32) {
    %c0_i32 = arith.constant 0 : i32
    %c0_i32_0 = arith.constant 0 : i32
    return %arg0, %c0_i32 : i32, i32
  }
}

</mosaic_0001>

<llo_original>
// kernel: tpu_custom_call.1
$region0: #{tpu_custom_call.1}
  #allocation0 [shape = 'u32[]', space=smem, size = 0x4, offset = 0x4, fixed_abs, tag = 'smem constant byte address 0x4 - core index']
  #allocation1 [shape = 'u32[72,128]{1,0:T(1,128)}', space=vmem, size = 0x9000, scoped, tag = 'internal scratch']
  %s0 = inlined_call_operand.vmem [shape: f32[8,16], index: 0, kind: input, shape index: {}]
  %s1 = inlined_call_operand.vmem [shape: f32[8,3], index: 1, kind: input, shape index: {}]
  %s2 = inlined_call_operand.vmem [shape: s32[3], index: 2, kind: input, shape index: {}]
  %s3 = inlined_call_operand.vmem [shape: bf16[16,32], index: 3, kind: input, shape index: {}]
  %s4 = inlined_call_operand.vmem [shape: f32[1,32], index: 4, kind: input, shape index: {}]
  %s5 = inlined_call_operand.vmem [shape: bf16[32,16], index: 5, kind: input, shape index: {}]
  %s6 = inlined_call_operand.vmem [shape: f32[1,16], index: 6, kind: input, shape index: {}]
  %s7 = inlined_call_operand.vmem [shape: bf16[16,48], index: 7, kind: input, shape index: {}]
  %s8 = inlined_call_operand.vmem [shape: bf16[3,48], index: 8, kind: input, shape index: {}]
  %s9 = inlined_call_operand.vmem [shape: f32[1,48], index: 9, kind: input, shape index: {}]
  %s10 = inlined_call_operand.vmem [shape: bf16[16,24], index: 10, kind: input, shape index: {}]
  %s11 = inlined_call_operand.vmem [shape: f32[1,24], index: 11, kind: input, shape index: {}]
  %s12 = inlined_call_operand.vmem [shape: bf16[24,32], index: 12, kind: input, shape index: {}]
  %s13 = inlined_call_operand.vmem [shape: f32[1,32], index: 13, kind: input, shape index: {}]
  %s14 = inlined_call_operand.vmem [shape: bf16[32,16], index: 14, kind: input, shape index: {}]
  %s15 = inlined_call_operand.vmem [shape: f32[1,16], index: 15, kind: input, shape index: {}]
  %s16 = inlined_call_operand.vmem [shape: bf16[32,16], index: 16, kind: input, shape index: {}]
  %s17 = inlined_call_operand.vmem [shape: f32[1,16], index: 17, kind: input, shape index: {}]
  %s18 = inlined_call_operand.hbm [shape: f32[8,32], index: 18, kind: output, shape index: {0}]
  %s19 = inlined_call_operand.hbm [shape: f32[8,16], index: 19, kind: output, shape index: {1}]
  %20 = xla_tuple %s18, %s19
  %s21 = sld [smem:[#allocation0]]
  $region94: #{tpu_custom_call.1} parent=0
    _
  %s23 = ssub.s32 1, %s21
  %s24 = scalar_select 0, %s23, %s21
  $region1: #{tpu_custom_call.1} parent=0
    #allocation2 [shape = 'u8[512]{0}', space=smem, size = 0x200, scoped, tag = 'input window, operand 2, single buffered']
    #allocation3 [shape = 's32[1]{0}', space=sflag, size = 0x4, scoped, tag = 'scoped memory for tpu_custom_call.1']
    #allocation4 [shape = 's32[1]{0}', space=sflag, size = 0x4, scoped, tag = 'scoped memory for tpu_custom_call.1']
    #allocation5 [shape = 'u8[4096]{0}', space=vmem, size = 0x1000, scoped, tag = 'output window, operand 0, single buffered']
    #allocation6 [shape = 'u8[4096]{0}', space=vmem, size = 0x1000, scoped, tag = 'output window, operand 1, single buffered']
    #allocation7 [shape = 's32[1]{0}', space=sflag, size = 0x4, scoped, tag = 'scoped memory for tpu_custom_call.1']
    %25 = vsyncpa [#allocation4], 0
    %26 = vsyncpa [#allocation3], 0
    %27 = vsyncpa [#allocation7], 0
    // Predicated region
    $region2: #{tpu_custom_call.1} parent=1 // pred_check
      _
    $region3: #{tpu_custom_call.1} parent=1 // pred_check_branch
      %29 = sbr.rel (0) target = $region5
    $region4: #{tpu_custom_call.1} parent=1 // pred_region
      _
    $region5: #{tpu_custom_call.1} parent=1 // pred_fallthru
      _
    // Predicated region
    $region6: #{tpu_custom_call.1} parent=1 // pred_check
      _
    $region7: #{tpu_custom_call.1} parent=1 // pred_check_branch
      %31 = sbr.rel (0) target = $region9
    $region8: #{tpu_custom_call.1} parent=1 // pred_region
      _
    $region9: #{tpu_custom_call.1} parent=1 // pred_fallthru
      _
    // Predicated region
    $region10: #{tpu_custom_call.1} parent=1 // pred_check
      _
    $region11: #{tpu_custom_call.1} parent=1 // pred_check_branch
      %33 = sbr.rel (0) target = $region13
    $region12: #{tpu_custom_call.1} parent=1 // pred_region
      %35 = vsyncadd [#allocation4], 0
      %s37 = sshll.u32 %s2, 4
      %s38 = int_to_ptr.vmem [resolvable:$true] %s37
      %40 = dma.vmem_to_smem %s38, 16, [#allocation2], [#allocation4]
    $region13: #{tpu_custom_call.1} parent=1 // pred_fallthru
      _
    // Predicated region
    $region14: #{tpu_custom_call.1} parent=1 // pred_check
      _
    $region15: #{tpu_custom_call.1} parent=1 // pred_check_branch
      %42 = sbr.rel (0) target = $region17
    $region16: #{tpu_custom_call.1} parent=1 // pred_region
      _
    $region17: #{tpu_custom_call.1} parent=1 // pred_fallthru
      _
    // Predicated region
    $region18: #{tpu_custom_call.1} parent=1 // pred_check
      _
    $region19: #{tpu_custom_call.1} parent=1 // pred_check_branch
      %44 = sbr.rel (0) target = $region21
    $region20: #{tpu_custom_call.1} parent=1 // pred_region
      _
    $region21: #{tpu_custom_call.1} parent=1 // pred_fallthru
      _
    // Predicated region
    $region22: #{tpu_custom_call.1} parent=1 // pred_check
      _
    $region23: #{tpu_custom_call.1} parent=1 // pred_check_branch
      %46 = sbr.rel (0) target = $region25
    $region24: #{tpu_custom_call.1} parent=1 // pred_region
      _
    $region25: #{tpu_custom_call.1} parent=1 // pred_fallthru
      _
    // Predicated region
    $region26: #{tpu_custom_call.1} parent=1 // pred_check
      _
    $region27: #{tpu_custom_call.1} parent=1 // pred_check_branch
      %48 = sbr.rel (0) target = $region29
    $region28: #{tpu_custom_call.1} parent=1 // pred_region
      _
    $region29: #{tpu_custom_call.1} parent=1 // pred_fallthru
      _
    // Predicated region
    $region30: #{tpu_custom_call.1} parent=1 // pred_check
      _
    $region31: #{tpu_custom_call.1} parent=1 // pred_check_branch
      %50 = sbr.rel (0) target = $region33
    $region32: #{tpu_custom_call.1} parent=1 // pred_region
      _
    $region33: #{tpu_custom_call.1} parent=1 // pred_fallthru
      _
    // Predicated region
    $region34: #{tpu_custom_call.1} parent=1 // pred_check
      _
    $region35: #{tpu_custom_call.1} parent=1 // pred_check_branch
      %52 = sbr.rel (0) target = $region37
    $region36: #{tpu_custom_call.1} parent=1 // pred_region
      _
    $region37: #{tpu_custom_call.1} parent=1 // pred_fallthru
      _
    // Predicated region
    $region38: #{tpu_custom_call.1} parent=1 // pred_check
      _
    $region39: #{tpu_custom_call.1} parent=1 // pred_check_branch
      %54 = sbr.rel (0) target = $region41
    $region40: #{tpu_custom_call.1} parent=1 // pred_region
      _
    $region41: #{tpu_custom_call.1} parent=1 // pred_fallthru
      _
    // Predicated region
    $region42: #{tpu_custom_call.1} parent=1 // pred_check
      _
    $region43: #{tpu_custom_call.1} parent=1 // pred_check_branch
      %56 = sbr.rel (0) target = $region45
    $region44: #{tpu_custom_call.1} parent=1 // pred_region
      _
    $region45: #{tpu_custom_call.1} parent=1 // pred_fallthru
      _
    // Predicated region
    $region46: #{tpu_custom_call.1} parent=1 // pred_check
      _
    $region47: #{tpu_custom_call.1} parent=1 // pred_check_branch
      %58 = sbr.rel (0) target = $region49
    $region48: #{tpu_custom_call.1} parent=1 // pred_region
      _
    $region49: #{tpu_custom_call.1} parent=1 // pred_fallthru
      _
    // Predicated region
    $region50: #{tpu_custom_call.1} parent=1 // pred_check
      _
    $region51: #{tpu_custom_call.1} parent=1 // pred_check_branch
      %60 = sbr.rel (0) target = $region53
    $region52: #{tpu_custom_call.1} parent=1 // pred_region
      _
    $region53: #{tpu_custom_call.1} parent=1 // pred_fallthru
      _
    // Predicated region
    $region54: #{tpu_custom_call.1} parent=1 // pred_check
      _
    $region55: #{tpu_custom_call.1} parent=1 // pred_check_branch
      %62 = sbr.rel (0) target = $region57
    $region56: #{tpu_custom_call.1} parent=1 // pred_region
      _
    $region57: #{tpu_custom_call.1} parent=1 // pred_fallthru
      _
    // Predicated region
    $region58: #{tpu_custom_call.1} parent=1 // pred_check
      _
    $region59: #{tpu_custom_call.1} parent=1 // pred_check_branch
      %64 = sbr.rel (0) target = $region61
    $region60: #{tpu_custom_call.1} parent=1 // pred_region
      _
    $region61: #{tpu_custom_call.1} parent=1 // pred_fallthru
      _
    // Predicated region
    $region62: #{tpu_custom_call.1} parent=1 // pred_check
      _
    $region63: #{tpu_custom_call.1} parent=1 // pred_check_branch
      %66 = sbr.rel (0) target = $region65
    $region64: #{tpu_custom_call.1} parent=1 // pred_region
      _
    $region65: #{tpu_custom_call.1} parent=1 // pred_fallthru
      _
    // Predicated region
    $region66: #{tpu_custom_call.1} parent=1 // pred_check
      _
    $region67: #{tpu_custom_call.1} parent=1 // pred_check_branch
      %68 = sbr.rel (0) target = $region69
    $region68: #{tpu_custom_call.1} parent=1 // pred_region
      _
    $region69: #{tpu_custom_call.1} parent=1 // pred_fallthru
      _
    // Predicated region
    $region70: #{tpu_custom_call.1} parent=1 // pred_check
      _
    $region71: #{tpu_custom_call.1} parent=1 // pred_check_branch
      %70 = sbr.rel (0) target = $region73
    $region72: #{tpu_custom_call.1} parent=1 // pred_region
      _
    $region73: #{tpu_custom_call.1} parent=1 // pred_fallthru
      _
    // Predicated region
    $region74: #{tpu_custom_call.1} parent=1 // pred_check
      _
    $region75: #{tpu_custom_call.1} parent=1 // pred_check_branch
      %72 = sbr.rel (0) target = $region77
    $region76: #{tpu_custom_call.1} parent=1 // pred_region
      %74 = dma.done [#allocation4], 16
    $region77: #{tpu_custom_call.1} parent=1 // pred_fallthru
      _
    %75 = sfence
    %v77 = vld [vmem:[%s0] sm:$0xff]
    %v78 = vld [vmem:[%s1] sm:$0xff]
    %v79 = vpack.c.bf16 %v77, %v77
    %v80 = vld [vmem:[%s3] sm:$0xf]
    %v81 = vld [vmem:[%s3 + $0x4] sm:$0xf]
    %v82 = vld [vmem:[%s4] sm:$0x1]
    %v84 = vperm.slane %v82, 0
    %v88 = vunpack.c.l.b16 %v80
    %v89 = vunpack.c.l.b16 %v81
    %v90 = vpack.c.b16 %v89, %v88
    %vm92 = vcmask 130048
    %v94 = vsel %vm92, %v79, 0
    %96 = vmatpush.bf16.msra.mxu0 0
    %97 = vmatpush.bf16.msra.mxu0 0
    %98 = vmatpush.bf16.msra.mxu0 0
    %99 = vmatpush.bf16.msra.mxu0 0
    %100 = vmatpush.bf16.msra.mxu0 0
    %101 = vmatpush.bf16.msra.mxu0 0
    %102 = vmatpush.bf16.msra.mxu0 0
    %103 = vmatpush.bf16.msra.mxu0 %v90
    %104 = vmatmul.bf16.gmra.mxu0 %v94
    %v105 = vpop.f32.mrf.mxu0
    %v106 = vadd.f32 %v84, %v105
    %v107 = vpop.f32.mrf.mxu0
    %108 = vdwg.mxu0
    %v109 = vmax.f32 %v106, 0.0
    %v110 = vpack.c.bf16 %v109, %v109
    %v111 = vld [vmem:[%s5] sm:$0xf]
    %v112 = vld [vmem:[%s5 + $0x4] sm:$0xf]
    %v113 = vld [vmem:[%s5 + $0x8] sm:$0xf]
    %v114 = vld [vmem:[%s5 + $0xc] sm:$0xf]
    %v115 = vld [vmem:[%s6] sm:$0x1]
    %v117 = vperm.slane %v115, 0
    %v123 = vunpack.c.l.b16 %v111
    %v124 = vunpack.c.l.b16 %v112
    %v125 = vunpack.c.l.b16 %v113
    %v126 = vunpack.c.l.b16 %v114
    %v127 = vpack.c.b16 %v124, %v123
    %v128 = vpack.c.b16 %v126, %v125
    %vm131 = vcmask 261120
    %v133 = vsel %vm131, %v110, 0
    %135 = vmatpush.bf16.msra.mxu0 0
    %136 = vmatpush.bf16.msra.mxu0 0
    %137 = vmatpush.bf16.msra.mxu0 0
    %138 = vmatpush.bf16.msra.mxu0 0
    %139 = vmatpush.bf16.msra.mxu0 0
    %140 = vmatpush.bf16.msra.mxu0 0
    %141 = vmatpush.bf16.msra.mxu0 %v128
    %142 = vmatpush.bf16.msra.mxu0 %v127
    %143 = vmatmul.bf16.gmra.mxu0 %v133
    %v144 = vpop.f32.mrf.mxu0
    %v145 = vadd.f32 %v117, %v144
    %v146 = vpop.f32.mrf.mxu0
    %147 = vdwg.mxu0
    %v148 = vmax.f32 %v145, 0.0
    %vm149 = vcmask 23552
    %v150 = vsel %vm149, %v78, -inf
    %151 = vmax.xlane.f32.xlu0 %v150
    %v152 = vpop.xlane.xlu0 %151
    %v153 = vlaneseq
    %v154 = vand.u32 %v153, 127
    %vm155 = vcmp.eq.f32.partialorder %v78, %v152
    %v156 = vsel %vm155, %v154, 3
    %v157 = vsel %vm149, %v156, 2147483647
    %v158 = vand.u32 %v157, 65535
    %v159 = vshra.s32 %v157, 16
    %v160 = vcvt.s32.f32 %v158
    %v161 = vcvt.s32.f32 %v159
    %162 = vmin.xlane.f32.xlu0 %v161
    %v163 = vpop.xlane.xlu0 %162
    %vm164 = vcmp.eq.f32.partialorder %v161, %v163
    %v165 = vsel %vm164, %v160, inf
    %166 = vmin.xlane.f32.xlu0 %v165
    %v167 = vpop.xlane.xlu0 %166
    %v168 = vcvt.f32.s32 %v167
    %v169 = vcvt.f32.s32 %v163
    %v170 = vshll.u32 %v169, 16
    %v171 = vadd.s32 %v170, %v168
    %v172 = vpack.c.bf16 %v148, %v148
    %v173 = vld [vmem:[%s7] sm:$0xf]
    %v174 = vld [vmem:[%s7 + $0x4] sm:$0xf]
    %v175 = vpack.c.bf16 %v78, %v78
    %v176 = vld [vmem:[%s8] sm:$0x3]
    %v178 = vsel %vm149, %v175, 0
    %vm180 = vcmask 1040384
    %vm181 = vcmask 1041408
    %v182 = vsel %vm180, 4294967295, 65535
    %v183 = vsel %vm181, %v182, 0
    %v185 = vand.u32 %v176, %v183
    %187 = vmatpush.bf16.msra.mxu0 0
    %188 = vmatpush.bf16.msra.mxu0 0
    %189 = vmatpush.bf16.msra.mxu0 0
    %190 = vmatpush.bf16.msra.mxu0 0
    %191 = vmatpush.bf16.msra.mxu0 0
    %192 = vmatpush.bf16.msra.mxu0 0
    %193 = vmatpush.bf16.msra.mxu0 0
    %194 = vmatpush.bf16.msra.mxu0 %v185
    %195 = vmatmul.bf16.gmra.mxu0 %v178
    %v196 = vpop.f32.mrf.mxu0
    %v197 = vadd.f32 0.0, %v196
    %v198 = vpop.f32.mrf.mxu0
    %199 = vdwg.mxu0
    %v202 = vunpack.c.l.b16 %v173
    %v203 = vunpack.c.l.b16 %v174
    %v204 = vpack.c.b16 %v203, %v202
    %v207 = vsel %vm92, %v172, 0
    %209 = vmatpush.bf16.msra.mxu0 0
    %210 = vmatpush.bf16.msra.mxu0 0
    %211 = vmatpush.bf16.msra.mxu0 0
    %212 = vmatpush.bf16.msra.mxu0 0
    %213 = vmatpush.bf16.msra.mxu0 0
    %214 = vmatpush.bf16.msra.mxu0 0
    %215 = vmatpush.bf16.msra.mxu0 0
    %216 = vmatpush.bf16.msra.mxu0 %v204
    %217 = vmatmul.bf16.gmra.mxu0 %v207
    %v218 = vpop.f32.mrf.mxu0
    %v219 = vadd.f32 %v197, %v218
    %v220 = vpop.f32.mrf.mxu0
    %221 = vdwg.mxu0
    %v222 = vld [vmem:[%s9] sm:$0x1]
    %v224 = vperm.slane %v222, 0
    %v226 = vadd.f32 %v219, %v224
    %v227 = vmax.f32 %v226, 0.0
    %vm228 = vcmp.eq.s32.totalorder %v171, 0
    %s229 = sld [smem:[#allocation2]]
    %p230 = scmp.gt.s32.totalorder %s229, 0
    %s231 = scalar_select %p230, 1, 0
    %v232 = vstv %s231
    %vm233 = vcmp.eq.s32.totalorder %v232, 1
    %vm234 = vmand %vm228, %vm233
    %v235 = vsel %vm234, %v227, 0.0
    %v236 = vadd.f32 %v235, 0.0
    %vm237 = vcmp.eq.s32.totalorder %v171, 1
    %s238 = sld [smem:[#allocation2 + $0x1]]
    %p239 = scmp.gt.s32.totalorder %s238, 0
    %s240 = scalar_select %p239, 1, 0
    %v241 = vstv %s240
    %vm242 = vcmp.eq.s32.totalorder %v241, 1
    %vm243 = vmand %vm237, %vm242
    %v244 = vsel %vm243, %v227, 0.0
    %246 = vrot.lane.b32.xlu0 %v244, 112
    %v247 = vpop.permute.xlu0 %246
    %v249 = vadd.f32 %v236, %v247
    %vm250 = vcmp.eq.s32.totalorder %v171, 2
    %s251 = sld [smem:[#allocation2 + $0x2]]
    %p252 = scmp.gt.s32.totalorder %s251, 0
    %s253 = scalar_select %p252, 1, 0
    %v254 = vstv %s253
    %vm255 = vcmp.eq.s32.totalorder %v254, 1
    %vm256 = vmand %vm250, %vm255
    %v257 = vsel %vm256, %v227, 0.0
    %259 = vrot.lane.b32.xlu0 %v257, 96
    %v260 = vpop.permute.xlu0 %259
    %v262 = vadd.f32 %v249, %v260
    %263 = vst.msk [vmem:[#allocation6] sm:$0xff] %vm92, %v262
    %v264 = vpack.c.bf16 %v262, %v262
    %v265 = vld [vmem:[%s10] sm:$0xf]
    %v266 = vld [vmem:[%s10 + $0x4] sm:$0xf]
    %v267 = vld [vmem:[%s11] sm:$0x1]
    %v269 = vperm.slane %v267, 0
    %v273 = vunpack.c.l.b16 %v265
    %v274 = vunpack.c.l.b16 %v266
    %v275 = vpack.c.b16 %v274, %v273
    %v278 = vsel %vm92, %v264, 0
    %280 = vmatpush.bf16.msra.mxu0 0
    %281 = vmatpush.bf16.msra.mxu0 0
    %282 = vmatpush.bf16.msra.mxu0 0
    %283 = vmatpush.bf16.msra.mxu0 0
    %284 = vmatpush.bf16.msra.mxu0 0
    %285 = vmatpush.bf16.msra.mxu0 0
    %286 = vmatpush.bf16.msra.mxu0 0
    %287 = vmatpush.bf16.msra.mxu0 %v275
    %288 = vmatmul.bf16.gmra.mxu0 %v278
    %v289 = vpop.f32.mrf.mxu0
    %v290 = vadd.f32 %v269, %v289
    %v291 = vpop.f32.mrf.mxu0
    %292 = vdwg.mxu0
    %v293 = vmax.f32 %v290, 0.0
    %v294 = vpack.c.bf16 %v293, %v293
    %v295 = vld [vmem:[%s12] sm:$0xf]
    %v296 = vld [vmem:[%s12 + $0x4] sm:$0xf]
    %v297 = vld [vmem:[%s12 + $0x8] sm:$0xf]
    %v298 = vld [vmem:[%s13] sm:$0x1]
    %v300 = vperm.slane %v298, 0
    %v305 = vunpack.c.l.b16 %v295
    %v306 = vunpack.c.l.b16 %v296
    %v307 = vunpack.c.l.b16 %v297
    %v308 = vpack.c.b16 %v306, %v305
    %v309 = vpack.c.b16 %v307, %v307
    %vm311 = vcmask 195584
    %v313 = vsel %vm311, %v294, 0
    %vm315 = vcmask 1043456
    %v317 = vsel %vm315, %v309, 0
    %319 = vmatpush.bf16.msra.mxu0 0
    %320 = vmatpush.bf16.msra.mxu0 0
    %321 = vmatpush.bf16.msra.mxu0 0
    %322 = vmatpush.bf16.msra.mxu0 0
    %323 = vmatpush.bf16.msra.mxu0 0
    %324 = vmatpush.bf16.msra.mxu0 0
    %325 = vmatpush.bf16.msra.mxu0 %v317
    %326 = vmatpush.bf16.msra.mxu0 %v308
    %327 = vmatmul.bf16.gmra.mxu0 %v313
    %v328 = vpop.f32.mrf.mxu0
    %v329 = vadd.f32 %v300, %v328
    %v330 = vpop.f32.mrf.mxu0
    %331 = vdwg.mxu0
    %v332 = vmax.f32 %v329, 0.0
    %v333 = vpack.c.bf16 %v332, %v332
    %v334 = vld [vmem:[%s14] sm:$0xf]
    %v335 = vld [vmem:[%s14 + $0x4] sm:$0xf]
    %v336 = vld [vmem:[%s14 + $0x8] sm:$0xf]
    %v337 = vld [vmem:[%s14 + $0xc] sm:$0xf]
    %v338 = vld [vmem:[%s15] sm:$0x1]
    %v340 = vperm.slane %v338, 0
    %v346 = vunpack.c.l.b16 %v334
    %v347 = vunpack.c.l.b16 %v335
    %v348 = vunpack.c.l.b16 %v336
    %v349 = vunpack.c.l.b16 %v337
    %v350 = vpack.c.b16 %v347, %v346
    %v351 = vpack.c.b16 %v349, %v348
    %v355 = vsel %vm131, %v333, 0
    %357 = vmatpush.bf16.msra.mxu0 0
    %358 = vmatpush.bf16.msra.mxu0 0
    %359 = vmatpush.bf16.msra.mxu0 0
    %360 = vmatpush.bf16.msra.mxu0 0
    %361 = vmatpush.bf16.msra.mxu0 0
    %362 = vmatpush.bf16.msra.mxu0 0
    %363 = vmatpush.bf16.msra.mxu0 %v351
    %364 = vmatpush.bf16.msra.mxu0 %v350
    %365 = vmatmul.bf16.gmra.mxu0 %v355
    %v366 = vpop.f32.mrf.mxu0
    %v367 = vadd.f32 %v340, %v366
    %v368 = vpop.f32.mrf.mxu0
    %369 = vdwg.mxu0
    %v370 = vld [vmem:[%s16] sm:$0xf]
    %v371 = vld [vmem:[%s16 + $0x4] sm:$0xf]
    %v372 = vld [vmem:[%s16 + $0x8] sm:$0xf]
    %v373 = vld [vmem:[%s16 + $0xc] sm:$0xf]
    %v374 = vld [vmem:[%s17] sm:$0x1]
    %v376 = vperm.slane %v374, 0
    %v382 = vunpack.c.l.b16 %v370
    %v383 = vunpack.c.l.b16 %v371
    %v384 = vunpack.c.l.b16 %v372
    %v385 = vunpack.c.l.b16 %v373
    %v386 = vpack.c.b16 %v383, %v382
    %v387 = vpack.c.b16 %v385, %v384
    %390 = vmatpush.bf16.msra.mxu0 0
    %391 = vmatpush.bf16.msra.mxu0 0
    %392 = vmatpush.bf16.msra.mxu0 0
    %393 = vmatpush.bf16.msra.mxu0 0
    %394 = vmatpush.bf16.msra.mxu0 0
    %395 = vmatpush.bf16.msra.mxu0 0
    %396 = vmatpush.bf16.msra.mxu0 %v387
    %397 = vmatpush.bf16.msra.mxu0 %v386
    %398 = vmatmul.bf16.gmra.mxu0 %v355
    %v399 = vpop.f32.mrf.mxu0
    %v400 = vadd.f32 %v376, %v399
    %v401 = vpop.f32.mrf.mxu0
    %402 = vdwg.mxu0
    %v403 = vmax.f32 %v400, 0.0
    %v404 = vand.u32 2147483647, %v400
    %v405 = vsub.f32 0.0, %v404
    %v406 = vmul.f32 %v405, 1.442695
    %v407 = vpow.pop %v406
    %v408 = vadd.f32 %v407, 1.0
    %v409 = vlog2.pop %v408
    %v410 = vmul.f32 %v409, 0.6931472
    %v411 = vmul.f32 -0.5, %v407
    %v412 = vadd.f32 %v411, 1.0
    %v413 = vmul.f32 %v412, %v407
    %v414 = vand.u32 2147483647, %v407
    %vm415 = vcmp.lt.f32.partialorder %v414, 0.0004427343
    %v416 = vsel %vm415, %v413, %v410
    %v417 = vadd.f32 %v403, %v416
    %418 = vst.msk [vmem:[#allocation5] sm:$0xff] %vm92, %v367
    %v419 = vadd.f32 %v417, 0.001
    %421 = vrot.lane.b32.xlu0 %v419, 16
    %v422 = vpop.permute.xlu0 %421
    %vm424 = vcmask 261248
    %425 = vst.msk [vmem:[#allocation5] sm:$0xff] %vm424, %v422
    // Predicated region
    $region78: #{tpu_custom_call.1} parent=1 // pred_check
      _
    $region79: #{tpu_custom_call.1} parent=1 // pred_check_branch
      %427 = sbr.rel (0) target = $region81
    $region80: #{tpu_custom_call.1} parent=1 // pred_region
      %429 = vsyncadd [#allocation3], 0
      %s431 = sshll.u32 [#allocation5], 4
      %s432 = int_to_ptr.vmem [resolvable:$true] %s431
      %s433 = sshll.u32 %s18, 4
      %s434 = int_to_ptr.hbm [resolvable:$true] %s433
      %436 = dma.vmem_to_hbm [thread:$0]  %s432, 128, %s434, [#allocation3]
    $region81: #{tpu_custom_call.1} parent=1 // pred_fallthru
      _
    // Predicated region
    $region82: #{tpu_custom_call.1} parent=1 // pred_check
      _
    $region83: #{tpu_custom_call.1} parent=1 // pred_check_branch
      %438 = sbr.rel (0) target = $region85
    $region84: #{tpu_custom_call.1} parent=1 // pred_region
      %440 = vsyncadd [#allocation7], 0
      %s442 = sshll.u32 [#allocation6], 4
      %s443 = int_to_ptr.vmem [resolvable:$true] %s442
      %s444 = sshll.u32 %s19, 4
      %s445 = int_to_ptr.hbm [resolvable:$true] %s444
      %447 = dma.vmem_to_hbm [thread:$0]  %s443, 128, %s445, [#allocation7]
    $region85: #{tpu_custom_call.1} parent=1 // pred_fallthru
      _
    // Predicated region
    $region86: #{tpu_custom_call.1} parent=1 // pred_check
      _
    $region87: #{tpu_custom_call.1} parent=1 // pred_check_branch
      %449 = sbr.rel (0) target = $region89
    $region88: #{tpu_custom_call.1} parent=1 // pred_region
      %451 = dma.done [#allocation3], 128
    $region89: #{tpu_custom_call.1} parent=1 // pred_fallthru
      _
    // Predicated region
    $region90: #{tpu_custom_call.1} parent=1 // pred_check
      _
    $region91: #{tpu_custom_call.1} parent=1 // pred_check_branch
      %453 = sbr.rel (0) target = $region93
    $region92: #{tpu_custom_call.1} parent=1 // pred_region
      %455 = dma.done [#allocation7], 128
    $region93: #{tpu_custom_call.1} parent=1 // pred_fallthru
      _
    %456 = vsyncpa [#allocation3], 1
    %457 = vsyncpa [#allocation7], 1
    %458 = vsyncpa [#allocation4], 1

// kernel: tpu_custom_call.1
$region0: #{tpu_custom_call.1}
  #allocation0 [shape = 'u32[]', space=smem, size = 0x4, offset = 0x4, fixed_abs, tag = 'smem constant byte address 0x4 - core index']
  #allocation1 [shape = 'u32[72,128]{1,0:T(1,128)}', space=vmem, size = 0x9000, scoped, tag = 'internal scratch']
  %s0 = inlined_call_operand.vmem [shape: f32[8,16], index: 0, kind: input, shape index: {}]
  %s1 = inlined_call_operand.vmem [shape: f32[8,3], index: 1, kind: input, shape index: {}]
  %s2 = inlined_call_operand.vmem [shape: s32[3], index: 2, kind: input, shape index: {}]
  %s3 = inlined_call_operand.vmem [shape: bf16[16,32], index: 3, kind: input, shape index: {}]
  %s4 = inlined_call_operand.vmem [shape: f32[1,32], index: 4, kind: input, shape index: {}]
  %s5 = inlined_call_operand.vmem [shape: bf16[32,16], index: 5, kind: input, shape index: {}]
  %s6 = inlined_call_operand.vmem [shape: f32[1,16], index: 6, kind: input, shape index: {}]
  %s7 = inlined_call_operand.vmem [shape: bf16[16,48], index: 7, kind: input, shape index: {}]
  %s8 = inlined_call_operand.vmem [shape: bf16[3,48], index: 8, kind: input, shape index: {}]
  %s9 = inlined_call_operand.vmem [shape: f32[1,48], index: 9, kind: input, shape index: {}]
  %s10 = inlined_call_operand.vmem [shape: bf16[16,24], index: 10, kind: input, shape index: {}]
  %s11 = inlined_call_operand.vmem [shape: f32[1,24], index: 11, kind: input, shape index: {}]
  %s12 = inlined_call_operand.vmem [shape: bf16[24,32], index: 12, kind: input, shape index: {}]
  %s13 = inlined_call_operand.vmem [shape: f32[1,32], index: 13, kind: input, shape index: {}]
  %s14 = inlined_call_operand.vmem [shape: bf16[32,16], index: 14, kind: input, shape index: {}]
  %s15 = inlined_call_operand.vmem [shape: f32[1,16], index: 15, kind: input, shape index: {}]
  %s16 = inlined_call_operand.vmem [shape: bf16[32,16], index: 16, kind: input, shape index: {}]
  %s17 = inlined_call_operand.vmem [shape: f32[1,16], index: 17, kind: input, shape index: {}]
  %s18 = inlined_call_operand.hbm [shape: f32[8,32], index: 18, kind: output, shape index: {0}]
  %s19 = inlined_call_operand.hbm [shape: f32[8,16], index: 19, kind: output, shape index: {1}]
  %20 = xla_tuple %s18, %s19
  %s21 = sld [smem:[#allocation0]]
  $region94: #{tpu_custom_call.1} parent=0
    _
  %s23 = ssub.s32 1, %s21
  %s24 = scalar_select 0, %s23, %s21
  $region1: #{tpu_custom_call.1} parent=0
    #allocation2 [shape = 'u8[512]{0}', space=smem, size = 0x200, scoped, tag = 'input window, operand 2, single buffered']
    #allocation3 [shape = 's32[1]{0}', space=sflag, size = 0x4, scoped, tag = 'scoped memory for tpu_custom_call.1']
    #allocation4 [shape = 's32[1]{0}', space=sflag, size = 0x4, scoped, tag = 'scoped memory for tpu_custom_call.1']
    #allocation5 [shape = 'u8[4096]{0}', space=vmem, size = 0x1000, scoped, tag = 'output window, operand 0, single buffered']
    #allocation6 [shape = 'u8[4096]{0}', space=vmem, size = 0x1000, scoped, tag = 'output window, operand 1, single buffered']
    #allocation7 [shape = 's32[1]{0}', space=sflag, size = 0x4, scoped, tag = 'scoped memory for tpu_custom_call.1']
    %25 = vsyncpa [#allocation4], 0
    %26 = vsyncpa [#allocation3], 0
    %27 = vsyncpa [#allocation7], 0
    // Predicated region
    $region2: #{tpu_custom_call.1} parent=1 // pred_check
      _
    $region3: #{tpu_custom_call.1} parent=1 // pred_check_branch
      %29 = sbr.rel (0) target = $region5
    $region4: #{tpu_custom_call.1} parent=1 // pred_region
      _
    $region5: #{tpu_custom_call.1} parent=1 // pred_fallthru
      _
    // Predicated region
    $region6: #{tpu_custom_call.1} parent=1 // pred_check
      _
    $region7: #{tpu_custom_call.1} parent=1 // pred_check_branch
      %31 = sbr.rel (0) target = $region9
    $region8: #{tpu_custom_call.1} parent=1 // pred_region
      _
    $region9: #{tpu_custom_call.1} parent=1 // pred_fallthru
      _
    // Predicated region
    $region10: #{tpu_custom_call.1} parent=1 // pred_check
      _
    $region11: #{tpu_custom_call.1} parent=1 // pred_check_branch
      %33 = sbr.rel (0) target = $region13
    $region12: #{tpu_custom_call.1} parent=1 // pred_region
      %35 = vsyncadd [#allocation4], 0
      %s37 = sshll.u32 %s2, 4
      %s38 = int_to_ptr.vmem [resolvable:$true] %s37
      %40 = dma.vmem_to_smem %s38, 16, [#allocation2], [#allocation4]
    $region13: #{tpu_custom_call.1} parent=1 // pred_fallthru
      _
    // Predicated region
    $region14: #{tpu_custom_call.1} parent=1 // pred_check
      _
    $region15: #{tpu_custom_call.1} parent=1 // pred_check_branch
      %42 = sbr.rel (0) target = $region17
    $region16: #{tpu_custom_call.1} parent=1 // pred_region
      _
    $region17: #{tpu_custom_call.1} parent=1 // pred_fallthru
      _
    // Predicated region
    $region18: #{tpu_custom_call.1} parent=1 // pred_check
      _
    $region19: #{tpu_custom_call.1} parent=1 // pred_check_branch
      %44 = sbr.rel (0) target = $region21
    $region20: #{tpu_custom_call.1} parent=1 // pred_region
      _
    $region21: #{tpu_custom_call.1} parent=1 // pred_fallthru
      _
    // Predicated region
    $region22: #{tpu_custom_call.1} parent=1 // pred_check
      _
    $region23: #{tpu_custom_call.1} parent=1 // pred_check_branch
      %46 = sbr.rel (0) target = $region25
    $region24: #{tpu_custom_call.1} parent=1 // pred_region
      _
    $region25: #{tpu_custom_call.1} parent=1 // pred_fallthru
      _
    // Predicated region
    $region26: #{tpu_custom_call.1} parent=1 // pred_check
      _
    $region27: #{tpu_custom_call.1} parent=1 // pred_check_branch
      %48 = sbr.rel (0) target = $region29
    $region28: #{tpu_custom_call.1} parent=1 // pred_region
      _
    $region29: #{tpu_custom_call.1} parent=1 // pred_fallthru
      _
    // Predicated region
    $region30: #{tpu_custom_call.1} parent=1 // pred_check
      _
    $region31: #{tpu_custom_call.1} parent=1 // pred_check_branch
      %50 = sbr.rel (0) target = $region33
    $region32: #{tpu_custom_call.1} parent=1 // pred_region
      _
    $region33: #{tpu_custom_call.1} parent=1 // pred_fallthru
      _
    // Predicated region
    $region34: #{tpu_custom_call.1} parent=1 // pred_check
      _
    $region35: #{tpu_custom_call.1} parent=1 // pred_check_branch
      %52 = sbr.rel (0) target = $region37
    $region36: #{tpu_custom_call.1} parent=1 // pred_region
      _
    $region37: #{tpu_custom_call.1} parent=1 // pred_fallthru
      _
    // Predicated region
    $region38: #{tpu_custom_call.1} parent=1 // pred_check
      _
    $region39: #{tpu_custom_call.1} parent=1 // pred_check_branch
      %54 = sbr.rel (0) target = $region41
    $region40: #{tpu_custom_call.1} parent=1 // pred_region
      _
    $region41: #{tpu_custom_call.1} parent=1 // pred_fallthru
      _
    // Predicated region
    $region42: #{tpu_custom_call.1} parent=1 // pred_check
      _
    $region43: #{tpu_custom_call.1} parent=1 // pred_check_branch
      %56 = sbr.rel (0) target = $region45
    $region44: #{tpu_custom_call.1} parent=1 // pred_region
      _
    $region45: #{tpu_custom_call.1} parent=1 // pred_fallthru
      _
    // Predicated region
    $region46: #{tpu_custom_call.1} parent=1 // pred_check
      _
    $region47: #{tpu_custom_call.1} parent=1 // pred_check_branch
      %58 = sbr.rel (0) target = $region49
    $region48: #{tpu_custom_call.1} parent=1 // pred_region
      _
    $region49: #{tpu_custom_call.1} parent=1 // pred_fallthru
      _
    // Predicated region
    $region50: #{tpu_custom_call.1} parent=1 // pred_check
      _
    $region51: #{tpu_custom_call.1} parent=1 // pred_check_branch
      %60 = sbr.rel (0) target = $region53
    $region52: #{tpu_custom_call.1} parent=1 // pred_region
      _
    $region53: #{tpu_custom_call.1} parent=1 // pred_fallthru
      _
    // Predicated region
    $region54: #{tpu_custom_call.1} parent=1 // pred_check
      _
    $region55: #{tpu_custom_call.1} parent=1 // pred_check_branch
      %62 = sbr.rel (0) target = $region57
    $region56: #{tpu_custom_call.1} parent=1 // pred_region
      _
    $region57: #{tpu_custom_call.1} parent=1 // pred_fallthru
      _
    // Predicated region
    $region58: #{tpu_custom_call.1} parent=1 // pred_check
      _
    $region59: #{tpu_custom_call.1} parent=1 // pred_check_branch
      %64 = sbr.rel (0) target = $region61
    $region60: #{tpu_custom_call.1} parent=1 // pred_region
      _
    $region61: #{tpu_custom_call.1} parent=1 // pred_fallthru
      _
    // Predicated region
    $region62: #{tpu_custom_call.1} parent=1 // pred_check
      _
    $region63: #{tpu_custom_call.1} parent=1 // pred_check_branch
      %66 = sbr.rel (0) target = $region65
    $region64: #{tpu_custom_call.1} parent=1 // pred_region
      _
    $region65: #{tpu_custom_call.1} parent=1 // pred_fallthru
      _
    // Predicated region
    $region66: #{tpu_custom_call.1} parent=1 // pred_check
      _
    $region67: #{tpu_custom_call.1} parent=1 // pred_check_branch
      %68 = sbr.rel (0) target = $region69
    $region68: #{tpu_custom_call.1} parent=1 // pred_region
      _
    $region69: #{tpu_custom_call.1} parent=1 // pred_fallthru
      _
    // Predicated region
    $region70: #{tpu_custom_call.1} parent=1 // pred_check
      _
    $region71: #{tpu_custom_call.1} parent=1 // pred_check_branch
      %70 = sbr.rel (0) target = $region73
    $region72: #{tpu_custom_call.1} parent=1 // pred_region
      _
    $region73: #{tpu_custom_call.1} parent=1 // pred_fallthru
      _
    // Predicated region
    $region74: #{tpu_custom_call.1} parent=1 // pred_check
      _
    $region75: #{tpu_custom_call.1} parent=1 // pred_check_branch
      %72 = sbr.rel (0) target = $region77
    $region76: #{tpu_custom_call.1} parent=1 // pred_region
      %74 = dma.done [#allocation4], 16
    $region77: #{tpu_custom_call.1} parent=1 // pred_fallthru
      _
    %75 = sfence
    %v77 = vld [vmem:[%s0] sm:$0xff]
    %v78 = vld [vmem:[%s1] sm:$0xff]
    %v79 = vpack.c.bf16 %v77, %v77
    %v80 = vld [vmem:[%s3] sm:$0xf]
    %v81 = vld [vmem:[%s3 + $0x4] sm:$0xf]
    %v82 = vld [vmem:[%s4] sm:$0x1]
    %v84 = vperm.slane %v82, 0
    %v88 = vunpack.c.l.b16 %v80
    %v89 = vunpack.c.l.b16 %v81
    %v90 = vpack.c.b16 %v89, %v88
    %vm92 = vcmask 130048
    %v94 = vsel %vm92, %v79, 0
    %96 = vmatpush.bf16.msra.mxu0 0
    %97 = vmatpush.bf16.msra.mxu0 0
    %98 = vmatpush.bf16.msra.mxu0 0
    %99 = vmatpush.bf16.msra.mxu0 0
    %100 = vmatpush.bf16.msra.mxu0 0
    %101 = vmatpush.bf16.msra.mxu0 0
    %102 = vmatpush.bf16.msra.mxu0 0
    %103 = vmatpush.bf16.msra.mxu0 %v90
    %104 = vmatmul.bf16.gmra.mxu0 %v94
    %v105 = vpop.f32.mrf.mxu0
    %v106 = vadd.f32 %v84, %v105
    %v107 = vpop.f32.mrf.mxu0
    %108 = vdwg.mxu0
    %v109 = vmax.f32 %v106, 0.0
    %v110 = vpack.c.bf16 %v109, %v109
    %v111 = vld [vmem:[%s5] sm:$0xf]
    %v112 = vld [vmem:[%s5 + $0x4] sm:$0xf]
    %v113 = vld [vmem:[%s5 + $0x8] sm:$0xf]
    %v114 = vld [vmem:[%s5 + $0xc] sm:$0xf]
    %v115 = vld [vmem:[%s6] sm:$0x1]
    %v117 = vperm.slane %v115, 0
    %v123 = vunpack.c.l.b16 %v111
    %v124 = vunpack.c.l.b16 %v112
    %v125 = vunpack.c.l.b16 %v113
    %v126 = vunpack.c.l.b16 %v114
    %v127 = vpack.c.b16 %v124, %v123
    %v128 = vpack.c.b16 %v126, %v125
    %vm131 = vcmask 261120
    %v133 = vsel %vm131, %v110, 0
    %135 = vmatpush.bf16.msra.mxu0 0
    %136 = vmatpush.bf16.msra.mxu0 0
    %137 = vmatpush.bf16.msra.mxu0 0
    %138 = vmatpush.bf16.msra.mxu0 0
    %139 = vmatpush.bf16.msra.mxu0 0
    %140 = vmatpush.bf16.msra.mxu0 0
    %141 = vmatpush.bf16.msra.mxu0 %v128
    %142 = vmatpush.bf16.msra.mxu0 %v127
    %143 = vmatmul.bf16.gmra.mxu0 %v133
    %v144 = vpop.f32.mrf.mxu0
    %v145 = vadd.f32 %v117, %v144
    %v146 = vpop.f32.mrf.mxu0
    %147 = vdwg.mxu0
    %v148 = vmax.f32 %v145, 0.0
    %vm149 = vcmask 23552
    %v150 = vsel %vm149, %v78, -inf
    %151 = vmax.xlane.f32.xlu0 %v150
    %v152 = vpop.xlane.xlu0 %151
    %v153 = vlaneseq
    %v154 = vand.u32 %v153, 127
    %vm155 = vcmp.eq.f32.partialorder %v78, %v152
    %v156 = vsel %vm155, %v154, 3
    %v157 = vsel %vm149, %v156, 2147483647
    %v158 = vand.u32 %v157, 65535
    %v159 = vshra.s32 %v157, 16
    %v160 = vcvt.s32.f32 %v158
    %v161 = vcvt.s32.f32 %v159
    %162 = vmin.xlane.f32.xlu0 %v161
    %v163 = vpop.xlane.xlu0 %162
    %vm164 = vcmp.eq.f32.partialorder %v161, %v163
    %v165 = vsel %vm164, %v160, inf
    %166 = vmin.xlane.f32.xlu0 %v165
    %v167 = vpop.xlane.xlu0 %166
    %v168 = vcvt.f32.s32 %v167
    %v169 = vcvt.f32.s32 %v163
    %v170 = vshll.u32 %v169, 16
    %v171 = vadd.s32 %v170, %v168
    %v172 = vpack.c.bf16 %v148, %v148
    %v173 = vld [vmem:[%s7] sm:$0xf]
    %v174 = vld [vmem:[%s7 + $0x4] sm:$0xf]
    %v175 = vpack.c.bf16 %v78, %v78
    %v176 = vld [vmem:[%s8] sm:$0x3]
    %v178 = vsel %vm149, %v175, 0
    %vm180 = vcmask 1040384
    %vm181 = vcmask 1041408
    %v182 = vsel %vm180, 4294967295, 65535
    %v183 = vsel %vm181, %v182, 0
    %v185 = vand.u32 %v176, %v183
    %187 = vmatpush.bf16.msra.mxu0 0
    %188 = vmatpush.bf16.msra.mxu0 0
    %189 = vmatpush.bf16.msra.mxu0 0
    %190 = vmatpush.bf16.msra.mxu0 0
    %191 = vmatpush.bf16.msra.mxu0 0
    %192 = vmatpush.bf16.msra.mxu0 0
    %193 = vmatpush.bf16.msra.mxu0 0
    %194 = vmatpush.bf16.msra.mxu0 %v185
    %195 = vmatmul.bf16.gmra.mxu0 %v178
    %v196 = vpop.f32.mrf.mxu0
    %v197 = vadd.f32 0.0, %v196
    %v198 = vpop.f32.mrf.mxu0
    %199 = vdwg.mxu0
    %v202 = vunpack.c.l.b16 %v173
    %v203 = vunpack.c.l.b16 %v174
    %v204 = vpack.c.b16 %v203, %v202
    %v207 = vsel %vm92, %v172, 0
    %209 = vmatpush.bf16.msra.mxu0 0
    %210 = vmatpush.bf16.msra.mxu0 0
    %211 = vmatpush.bf16.msra.mxu0 0
    %212 = vmatpush.bf16.msra.mxu0 0
    %213 = vmatpush.bf16.msra.mxu0 0
    %214 = vmatpush.bf16.msra.mxu0 0
    %215 = vmatpush.bf16.msra.mxu0 0
    %216 = vmatpush.bf16.msra.mxu0 %v204
    %217 = vmatmul.bf16.gmra.mxu0 %v207
    %v218 = vpop.f32.mrf.mxu0
    %v219 = vadd.f32 %v197, %v218
    %v220 = vpop.f32.mrf.mxu0
    %221 = vdwg.mxu0
    %v222 = vld [vmem:[%s9] sm:$0x1]
    %v224 = vperm.slane %v222, 0
    %v226 = vadd.f32 %v219, %v224
    %v227 = vmax.f32 %v226, 0.0
    %vm228 = vcmp.eq.s32.totalorder %v171, 0
    %s229 = sld [smem:[#allocation2]]
    %p230 = scmp.gt.s32.totalorder %s229, 0
    %s231 = scalar_select %p230, 1, 0
    %v232 = vstv %s231
    %vm233 = vcmp.eq.s32.totalorder %v232, 1
    %vm234 = vmand %vm228, %vm233
    %v235 = vsel %vm234, %v227, 0.0
    %v236 = vadd.f32 %v235, 0.0
    %vm237 = vcmp.eq.s32.totalorder %v171, 1
    %s238 = sld [smem:[#allocation2 + $0x1]]
    %p239 = scmp.gt.s32.totalorder %s238, 0
    %s240 = scalar_select %p239, 1, 0
    %v241 = vstv %s240
    %vm242 = vcmp.eq.s32.totalorder %v241, 1
    %vm243 = vmand %vm237, %vm242
    %v244 = vsel %vm243, %v227, 0.0
    %246 = vrot.lane.b32.xlu0 %v244, 112
    %v247 = vpop.permute.xlu0 %246
    %v249 = vadd.f32 %v236, %v247
    %vm250 = vcmp.eq.s32.totalorder %v171, 2
    %s251 = sld [smem:[#allocation2 + $0x2]]
    %p252 = scmp.gt.s32.totalorder %s251, 0
    %s253 = scalar_select %p252, 1, 0
    %v254 = vstv %s253
    %vm255 = vcmp.eq.s32.totalorder %v254, 1
    %vm256 = vmand %vm250, %vm255
    %v257 = vsel %vm256, %v227, 0.0
    %259 = vrot.lane.b32.xlu0 %v257, 96
    %v260 = vpop.permute.xlu0 %259
    %v262 = vadd.f32 %v249, %v260
    %263 = vst.msk [vmem:[#allocation6] sm:$0xff] %vm92, %v262
    %v264 = vpack.c.bf16 %v262, %v262
    %v265 = vld [vmem:[%s10] sm:$0xf]
    %v266 = vld [vmem:[%s10 + $0x4] sm:$0xf]
    %v267 = vld [vmem:[%s11] sm:$0x1]
    %v269 = vperm.slane %v267, 0
    %v273 = vunpack.c.l.b16 %v265
    %v274 = vunpack.c.l.b16 %v266
    %v275 = vpack.c.b16 %v274, %v273
    %v278 = vsel %vm92, %v264, 0
    %280 = vmatpush.bf16.msra.mxu0 0
    %281 = vmatpush.bf16.msra.mxu0 0
    %282 = vmatpush.bf16.msra.mxu0 0
    %283 = vmatpush.bf16.msra.mxu0 0
    %284 = vmatpush.bf16.msra.mxu0 0
    %285 = vmatpush.bf16.msra.mxu0 0
    %286 = vmatpush.bf16.msra.mxu0 0
    %287 = vmatpush.bf16.msra.mxu0 %v275
    %288 = vmatmul.bf16.gmra.mxu0 %v278
    %v289 = vpop.f32.mrf.mxu0
    %v290 = vadd.f32 %v269, %v289
    %v291 = vpop.f32.mrf.mxu0
    %292 = vdwg.mxu0
    %v293 = vmax.f32 %v290, 0.0
    %v294 = vpack.c.bf16 %v293, %v293
    %v295 = vld [vmem:[%s12] sm:$0xf]
    %v296 = vld [vmem:[%s12 + $0x4] sm:$0xf]
    %v297 = vld [vmem:[%s12 + $0x8] sm:$0xf]
    %v298 = vld [vmem:[%s13] sm:$0x1]
    %v300 = vperm.slane %v298, 0
    %v305 = vunpack.c.l.b16 %v295
    %v306 = vunpack.c.l.b16 %v296
    %v307 = vunpack.c.l.b16 %v297
    %v308 = vpack.c.b16 %v306, %v305
    %v309 = vpack.c.b16 %v307, %v307
    %vm311 = vcmask 195584
    %v313 = vsel %vm311, %v294, 0
    %vm315 = vcmask 1043456
    %v317 = vsel %vm315, %v309, 0
    %319 = vmatpush.bf16.msra.mxu0 0
    %320 = vmatpush.bf16.msra.mxu0 0
    %321 = vmatpush.bf16.msra.mxu0 0
    %322 = vmatpush.bf16.msra.mxu0 0
    %323 = vmatpush.bf16.msra.mxu0 0
    %324 = vmatpush.bf16.msra.mxu0 0
    %325 = vmatpush.bf16.msra.mxu0 %v317
    %326 = vmatpush.bf16.msra.mxu0 %v308
    %327 = vmatmul.bf16.gmra.mxu0 %v313
    %v328 = vpop.f32.mrf.mxu0
    %v329 = vadd.f32 %v300, %v328
    %v330 = vpop.f32.mrf.mxu0
    %331 = vdwg.mxu0
    %v332 = vmax.f32 %v329, 0.0
    %v333 = vpack.c.bf16 %v332, %v332
    %v334 = vld [vmem:[%s14] sm:$0xf]
    %v335 = vld [vmem:[%s14 + $0x4] sm:$0xf]
    %v336 = vld [vmem:[%s14 + $0x8] sm:$0xf]
    %v337 = vld [vmem:[%s14 + $0xc] sm:$0xf]
    %v338 = vld [vmem:[%s15] sm:$0x1]
    %v340 = vperm.slane %v338, 0
    %v346 = vunpack.c.l.b16 %v334
    %v347 = vunpack.c.l.b16 %v335
    %v348 = vunpack.c.l.b16 %v336
    %v349 = vunpack.c.l.b16 %v337
    %v350 = vpack.c.b16 %v347, %v346
    %v351 = vpack.c.b16 %v349, %v348
    %v355 = vsel %vm131, %v333, 0
    %357 = vmatpush.bf16.msra.mxu0 0
    %358 = vmatpush.bf16.msra.mxu0 0
    %359 = vmatpush.bf16.msra.mxu0 0
    %360 = vmatpush.bf16.msra.mxu0 0
    %361 = vmatpush.bf16.msra.mxu0 0
    %362 = vmatpush.bf16.msra.mxu0 0
    %363 = vmatpush.bf16.msra.mxu0 %v351
    %364 = vmatpush.bf16.msra.mxu0 %v350
    %365 = vmatmul.bf16.gmra.mxu0 %v355
    %v366 = vpop.f32.mrf.mxu0
    %v367 = vadd.f32 %v340, %v366
    %v368 = vpop.f32.mrf.mxu0
    %369 = vdwg.mxu0
    %v370 = vld [vmem:[%s16] sm:$0xf]
    %v371 = vld [vmem:[%s16 + $0x4] sm:$0xf]
    %v372 = vld [vmem:[%s16 + $0x8] sm:$0xf]
    %v373 = vld [vmem:[%s16 + $0xc] sm:$0xf]
    %v374 = vld [vmem:[%s17] sm:$0x1]
    %v376 = vperm.slane %v374, 0
    %v382 = vunpack.c.l.b16 %v370
    %v383 = vunpack.c.l.b16 %v371
    %v384 = vunpack.c.l.b16 %v372
    %v385 = vunpack.c.l.b16 %v373
    %v386 = vpack.c.b16 %v383, %v382
    %v387 = vpack.c.b16 %v385, %v384
    %390 = vmatpush.bf16.msra.mxu0 0
    %391 = vmatpush.bf16.msra.mxu0 0
    %392 = vmatpush.bf16.msra.mxu0 0
    %393 = vmatpush.bf16.msra.mxu0 0
    %394 = vmatpush.bf16.msra.mxu0 0
    %395 = vmatpush.bf16.msra.mxu0 0
    %396 = vmatpush.bf16.msra.mxu0 %v387
    %397 = vmatpush.bf16.msra.mxu0 %v386
    %398 = vmatmul.bf16.gmra.mxu0 %v355
    %v399 = vpop.f32.mrf.mxu0
    %v400 = vadd.f32 %v376, %v399
    %v401 = vpop.f32.mrf.mxu0
    %402 = vdwg.mxu0
    %v403 = vmax.f32 %v400, 0.0
    %v404 = vand.u32 2147483647, %v400
    %v405 = vsub.f32 0.0, %v404
    %v406 = vmul.f32 %v405, 1.442695
    %v407 = vpow.pop %v406
    %v408 = vadd.f32 %v407, 1.0
    %v409 = vlog2.pop %v408
    %v410 = vmul.f32 %v409, 0.6931472
    %v411 = vmul.f32 -0.5, %v407
    %v412 = vadd.f32 %v411, 1.0
    %v413 = vmul.f32 %v412, %v407
    %v414 = vand.u32 2147483647, %v407
    %vm415 = vcmp.lt.f32.partialorder %v414, 0.0004427343
    %v416 = vsel %vm415, %v413, %v410
    %v417 = vadd.f32 %v403, %v416
    %418 = vst.msk [vmem:[#allocation5] sm:$0xff] %vm92, %v367
    %v419 = vadd.f32 %v417, 0.001
    %421 = vrot.lane.b32.xlu0 %v419, 16
    %v422 = vpop.permute.xlu0 %421
    %vm424 = vcmask 261248
    %425 = vst.msk [vmem:[#allocation5] sm:$0xff] %vm424, %v422
    // Predicated region
    $region78: #{tpu_custom_call.1} parent=1 // pred_check
      _
    $region79: #{tpu_custom_call.1} parent=1 // pred_check_branch
      %427 = sbr.rel (0) target = $region81
    $region80: #{tpu_custom_call.1} parent=1 // pred_region
      %429 = vsyncadd [#allocation3], 0
      %s431 = sshll.u32 [#allocation5], 4
      %s432 = int_to_ptr.vmem [resolvable:$true] %s431
      %s433 = sshll.u32 %s18, 4
      %s434 = int_to_ptr.hbm [resolvable:$true] %s433
      %436 = dma.vmem_to_hbm [thread:$0]  %s432, 128, %s434, [#allocation3]
    $region81: #{tpu_custom_call.1} parent=1 // pred_fallthru
      _
    // Predicated region
    $region82: #{tpu_custom_call.1} parent=1 // pred_check
      _
    $region83: #{tpu_custom_call.1} parent=1 // pred_check_branch
      %438 = sbr.rel (0) target = $region85
    $region84: #{tpu_custom_call.1} parent=1 // pred_region
      %440 = vsyncadd [#allocation7], 0
      %s442 = sshll.u32 [#allocation6], 4
      %s443 = int_to_ptr.vmem [resolvable:$true] %s442
      %s444 = sshll.u32 %s19, 4
      %s445 = int_to_ptr.hbm [resolvable:$true] %s444
      %447 = dma.vmem_to_hbm [thread:$0]  %s443, 128, %s445, [#allocation7]
    $region85: #{tpu_custom_call.1} parent=1 // pred_fallthru
      _
    // Predicated region
    $region86: #{tpu_custom_call.1} parent=1 // pred_check
      _
    $region87: #{tpu_custom_call.1} parent=1 // pred_check_branch
      %449 = sbr.rel (0) target = $region89
    $region88: #{tpu_custom_call.1} parent=1 // pred_region
      %451 = dma.done [#allocation3], 128
    $region89: #{tpu_custom_call.1} parent=1 // pred_fallthru
      _
    // Predicated region
    $region90: #{tpu_custom_call.1} parent=1 // pred_check
      _
    $region91: #{tpu_custom_call.1} parent=1 // pred_check_branch
      %453 = sbr.rel (0) target = $region93
    $region92: #{tpu_custom_call.1} parent=1 // pred_region
      %455 = dma.done [#allocation7], 128
    $region93: #{tpu_custom_call.1} parent=1 // pred_fallthru
      _
    %456 = vsyncpa [#allocation3], 1
    %457 = vsyncpa [#allocation7], 1
    %458 = vsyncpa [#allocation4], 1

</llo_original>
